<compile_context>
chip_gen: v6e
topology: v6e:2x2x1
jax: 0.10.0
libtpu: 0.0.40
codegen_flags: <defaults>
</compile_context>

<pallas_src>
import functools

import jax
import jax.numpy as jnp
import numpy as np
from jax.experimental import pallas as pl
from jax.experimental.pallas import tpu as pltpu


NPAD = 128  # lane-dense width for the packed rhs slabs / packed output slab


def _has_native_bf16_vpu():
    """v6e/v7x have a bf16 VPU; v5e and older do not (keep f32 VPU math there)."""
    try:
        kind = jax.devices()[0].device_kind.lower()
    except Exception:  # pragma: no cover - conservative fallback
        return False
    return any(tag in kind for tag in ("v6", "v7", "7x"))


def _rcnn_head_kernel(kb, kc, bf16_vpu, x_ref, sup_ref, w1_ref, w2_ref, b_ref,
                      out_ref):
    """One grid step = one (image, ROI-row-tile).

    x_ref   : (1, T, D)    f32   pooled ROI features (bf16 cast happens in-kernel)
    sup_ref : (1, 1, D)    f32   pos_support_feat for this image
    w1_ref  : (D, NPAD)    bf16  [W_bbox | 0]              (lane-dense packed)
    w2_ref  : (D, NPAD)    bf16  [0 | W_cls | 0]           (cls cols at [kb, kb+kc))
    b_ref   : (1, NPAD)    f32   [b_bbox | b_cls | 0]
    out_ref : (1, T, NPAD) bf16  [bbox_pred | cls_score | cls_prob | 0]
    """
    x_f32 = x_ref[0]                                  # (T, D) f32
    x_bf = x_f32.astype(jnp.bfloat16)                 # MXU operand (bbox matmul)

    # combined_feat = _roi_feat * _vec.  bf16 VPU on v6e/v7x; f32 VPU on v5e.
    if bf16_vpu:
        comb_bf = x_bf * sup_ref[0].astype(jnp.bfloat16)
    else:
        comb_bf = (x_f32 * sup_ref[0]).astype(jnp.bfloat16)

    # Two accumulating MXU passes into ONE lane-dense (T, 128) f32 result:
    #   cols [0, kb)      = x    @ W_bbox + b_bbox   -> bbox_pred
    #   cols [kb, kb+kc)  = comb @ W_cls  + b_cls    -> cls_score
    #   cols [kb+kc, 128) = 0                        -> cls_prob written below
    res = (jnp.dot(x_bf, w1_ref[...], preferred_element_type=jnp.float32)
           + jnp.dot(comb_bf, w2_ref[...], preferred_element_type=jnp.float32)
           + b_ref[...])                              # (T, NPAD) f32

    t = res.shape[0]
    col = jax.lax.broadcasted_iota(jnp.int32, (t, NPAD), 1)
    score_mask = jnp.logical_and(col >= kb, col < kb + kc)

    # cls_prob = softmax(cls_score, dim=1) over the kc score lanes (masked).
    s = jnp.where(score_mask, res, -jnp.inf)
    m = jnp.max(s, axis=-1, keepdims=True)
    e = jnp.exp(s - m)                                # zero outside score lanes
    denom = jnp.sum(e, axis=-1, keepdims=True)
    prob = e * pl.reciprocal(denom, approx=True)      # EUP reciprocal
    prob = pltpu.roll(prob, shift=kc, axis=1)         # move to cols [kb+kc, kb+2kc)

    # Lane-dense packed store: [bbox | score | prob | zeros]
    packed = jnp.where(col < kb + kc, res, prob)
    out_ref[0] = packed.astype(out_ref.dtype)


def meta_rcnn_head(pooled_feat, pos_support_feat, w_bbox, b_bbox, w_cls, b_cls):
    """pooled_feat: (B, R, D)  pos_support_feat: (B, D)  w_*: (D, K)  b_*: (K,)."""
    B, R, D = pooled_feat.shape
    kb = w_bbox.shape[1]
    kc = w_cls.shape[1]
    assert kb + 2 * kc <= NPAD, "packed output slab must fit in 128 lanes"

    # Pack each linear layer into its own lane-dense (D, 128) bf16 rhs slab so the
    # kernel accumulates two matmuls into a single (T, 128) result (no concat /
    # row-slice VMEM copies inside the kernel).
    w1 = jnp.zeros((D, NPAD), jnp.float32).at[:, :kb].set(w_bbox)
    w1 = w1.astype(jnp.bfloat16)
    w2 = jnp.zeros((D, NPAD), jnp.float32).at[:, kb:kb + kc].set(w_cls)
    w2 = w2.astype(jnp.bfloat16)
    b_packed = jnp.zeros((1, NPAD), jnp.float32)
    b_packed = b_packed.at[:, :kb].set(b_bbox.reshape(1, kb))
    b_packed = b_packed.at[:, kb:kb + kc].set(b_cls.reshape(1, kc))

    # One ROI tile per image -> grid=(B, 1).  If B == 1, split rows into 2 tiles
    # so a v7x megacore still has two parallel grid steps to shard across TCs.
    n_row_tiles = 1 if B >= 2 else 2
    row_tile = -(-R // (n_row_tiles * 16)) * 16   # multiple of 16 (bf16 out tiling)
    r_pad = row_tile * n_row_tiles

    x = pooled_feat.astype(jnp.float32)   # stays f32 in HBM; bf16 cast is in-kernel
    if r_pad != R:
        x = jnp.pad(x, ((0, 0), (0, r_pad - R), (0, 0)))
    sup = pos_support_feat.astype(jnp.float32).reshape(B, 1, D)

    grid_spec = pltpu.PrefetchScalarGridSpec(
        num_scalar_prefetch=0,
        grid=(B, n_row_tiles),
        in_specs=[
            pl.BlockSpec((1, row_tile, D), lambda b, t: (b, t, 0)),   # pooled tile
            pl.BlockSpec((1, 1, D), lambda b, t: (b, 0, 0)),          # support vec (per image)
            pl.BlockSpec((D, NPAD), lambda b, t: (0, 0)),             # [W_bbox|0] (resident)
            pl.BlockSpec((D, NPAD), lambda b, t: (0, 0)),             # [0|W_cls|0] (resident)
            pl.BlockSpec((1, NPAD), lambda b, t: (0, 0)),             # packed bias (resident)
        ],
        out_specs=pl.BlockSpec((1, row_tile, NPAD), lambda b, t: (b, t, 0)),
    )
    packed = pl.pallas_call(
        functools.partial(_rcnn_head_kernel, kb, kc, _has_native_bf16_vpu()),
        out_shape=jax.ShapeDtypeStruct((B, r_pad, NPAD), jnp.bfloat16),
        grid_spec=grid_spec,
        compiler_params=pltpu.CompilerParams(
            dimension_semantics=("parallel", "parallel")),
    )(x, sup, w1, w2, b_packed)

    # Crop padded rows, upcast once, and unpack the lane-dense slab.
    packed = packed[:, :R, :].astype(jnp.float32)
    bbox_pred = packed[..., :kb]
    cls_score = packed[..., kb:kb + kc]
    cls_prob = packed[..., kb + kc:kb + 2 * kc]
    return bbox_pred, cls_prob, cls_score


def meta_rcnn_forward_eval(pooled_feat, support_feats, params, *, n_shot):
    """Eval-mode slice of _metaRCNN.forward: returns (cls_prob, bbox_pred, cls_score)
    flattened to (batch*num_rois, ...), matching the torch cat over batch chunks."""
    B, R, _ = pooled_feat.shape
    # pos_support_feat = support_feats[:, :n_shot, :].mean(1)  -- hoisted out of kernel
    pos_support = jnp.mean(support_feats[:, :n_shot, :].astype(jnp.float32), axis=1)
    bbox_pred, cls_prob, cls_score = meta_rcnn_head(
        pooled_feat, pos_support,
        params["w_bbox"], params["b_bbox"], params["w_cls"], params["b_cls"])
    return (cls_prob.reshape(B * R, -1),
            bbox_pred.reshape(B * R, -1),
            cls_score.reshape(B * R, -1))


if __name__ == "__main__":
    # Small, forward-consistent shapes.
    classes = ("__background__", "cls_a", "cls_b")
    n_classes = len(classes)
    batch = 2            # im_data batch
    num_rois = 300       # cfg.TEST.RPN_POST_NMS_TOP_N (eval)
    feat_dim = 128       # output dim of _head_to_tail / prn_network (small stand-in)
    n_way, n_shot = 2, 5
    bbox_dim = 4 * n_classes   # RCNN_bbox_pred out features
    cls_dim = 2                # RCNN_cls_score: binary fg/bg in meta RCNN

    key = jax.random.PRNGKey(0)
    k1, k2, k3, k4 = jax.random.split(key, 4)

    # Stand-ins for _head_to_tail(ROIAlign(RCNN_base(im_data))) and
    # prn_network(support_ims)  (eval mode: only the n_shot positive supports).
    pooled_feat = jax.random.normal(k1, (batch, num_rois, feat_dim), jnp.float32)
    support_feats = jax.random.normal(k2, (batch, n_shot, feat_dim), jnp.float32)

    # Deterministic parameter init mirroring _init_weights (normal, zero bias).
    params = {
        "w_bbox": 0.001 * jax.random.normal(k3, (feat_dim, bbox_dim), jnp.float32),
        "b_bbox": jnp.zeros((bbox_dim,), jnp.float32),
        "w_cls":  0.01 * jax.random.normal(k4, (feat_dim, cls_dim), jnp.float32),
        "b_cls":  jnp.zeros((cls_dim,), jnp.float32),
    }

    cls_prob, bbox_pred, cls_score = jax.block_until_ready(
        meta_rcnn_forward_eval(pooled_feat, support_feats, params, n_shot=n_shot))

    assert cls_prob.shape == (batch * num_rois, cls_dim)
    assert bbox_pred.shape == (batch * num_rois, bbox_dim)
    assert cls_score.shape == (batch * num_rois, cls_dim)

    # Pure-JAX reference (f32) for a sanity check (bf16 MXU + bf16 slab -> loose tol).
    pos_sup = support_feats[:, :n_shot, :].mean(axis=1)                  # (B, D)
    x2d = pooled_feat.reshape(batch * num_rois, feat_dim)
    bbox_ref = x2d @ params["w_bbox"] + params["b_bbox"]
    comb = (pooled_feat * pos_sup[:, None, :]).reshape(batch * num_rois, feat_dim)
    score_ref = comb @ params["w_cls"] + params["b_cls"]
    prob_ref = jax.nn.softmax(score_ref, axis=-1)

    np.testing.assert_allclose(np.asarray(bbox_pred), np.asarray(bbox_ref),
                               rtol=5e-2, atol=5e-3)
    np.testing.assert_allclose(np.asarray(cls_score), np.asarray(score_ref),
                               rtol=5e-2, atol=5e-3)
    np.testing.assert_allclose(np.asarray(cls_prob), np.asarray(prob_ref),
                               rtol=5e-2, atol=5e-3)

    print("KERNEL_OK")
</pallas_src>

<mosaic_0001>
module attributes {stable_mosaic.version = 11 : i64} {
  func.func @_rcnn_head_kernel(%arg0: i32, %arg1: i32, %arg2: memref<1x304x128xf32, #tpu.memory_space<vmem>>, %arg3: memref<1x1x128xf32, #tpu.memory_space<vmem>>, %arg4: memref<128x128xbf16, #tpu.memory_space<vmem>>, %arg5: memref<128x128xbf16, #tpu.memory_space<vmem>>, %arg6: memref<1x128xf32, #tpu.memory_space<vmem>>, %arg7: memref<1x304x128xbf16, #tpu.memory_space<vmem>>) attributes {dimension_semantics = [#tpu.dimension_semantics<parallel>, #tpu.dimension_semantics<parallel>], iteration_bounds = array<i64: 2, 1>, scalar_prefetch = 0 : i64, scratch_operands = 0 : i64, tpu.core_type = #tpu.core_type<tc>, window_params = [{transform_indices = @transform_0, window_bounds = array<i64: 1, 304, 128>}, {transform_indices = @transform_1, window_bounds = array<i64: 1, 1, 128>}, {pipeline_mode = #tpu.pipeline_mode<synchronous>, transform_indices = @transform_2, window_bounds = array<i64: 128, 128>}, {pipeline_mode = #tpu.pipeline_mode<synchronous>, transform_indices = @transform_3, window_bounds = array<i64: 128, 128>}, {pipeline_mode = #tpu.pipeline_mode<synchronous>, transform_indices = @transform_4, window_bounds = array<i64: 1, 128>}, {transform_indices = @transform_5, window_bounds = array<i64: 1, 304, 128>}]} {
    %c0 = arith.constant 0 : index
    %c0_0 = arith.constant 0 : index
    %c0_1 = arith.constant 0 : index
    %0 = vector.load %arg2[%c0, %c0_0, %c0_1] : memref<1x304x128xf32, #tpu.memory_space<vmem>>, vector<1x304x128xf32>
    %1 = vector.shape_cast %0 : vector<1x304x128xf32> to vector<304x128xf32>
    %2 = arith.truncf %1 : vector<304x128xf32> to vector<304x128xbf16>
    %c0_2 = arith.constant 0 : index
    %c0_3 = arith.constant 0 : index
    %c0_4 = arith.constant 0 : index
    %3 = vector.load %arg3[%c0_2, %c0_3, %c0_4] : memref<1x1x128xf32, #tpu.memory_space<vmem>>, vector<1x1x128xf32>
    %4 = vector.shape_cast %3 : vector<1x1x128xf32> to vector<1x128xf32>
    %5 = vector.broadcast %4 : vector<1x128xf32> to vector<304x128xf32>
    %6 = arith.mulf %1, %5 : vector<304x128xf32>
    %7 = arith.truncf %6 : vector<304x128xf32> to vector<304x128xbf16>
    %c0_5 = arith.constant 0 : index
    %c0_6 = arith.constant 0 : index
    %8 = vector.load %arg4[%c0_5, %c0_6] : memref<128x128xbf16, #tpu.memory_space<vmem>>, vector<128x128xbf16>
    %cst = arith.constant dense<0.000000e+00> : vector<304x128xf32>
    %9 = tpu.matmul %2, %8, %cst {dimension_numbers = #tpu.dot_dimension_numbers<[1], [0], [0], [1], [0, 0, 1, 1], [], []>} : vector<304x128xbf16>, vector<128x128xbf16>, vector<304x128xf32> -> vector<304x128xf32>
    %c0_7 = arith.constant 0 : index
    %c0_8 = arith.constant 0 : index
    %10 = vector.load %arg5[%c0_7, %c0_8] : memref<128x128xbf16, #tpu.memory_space<vmem>>, vector<128x128xbf16>
    %cst_9 = arith.constant dense<0.000000e+00> : vector<304x128xf32>
    %11 = tpu.matmul %7, %10, %cst_9 {dimension_numbers = #tpu.dot_dimension_numbers<[1], [0], [0], [1], [0, 0, 1, 1], [], []>} : vector<304x128xbf16>, vector<128x128xbf16>, vector<304x128xf32> -> vector<304x128xf32>
    %12 = arith.addf %9, %11 : vector<304x128xf32>
    %c0_10 = arith.constant 0 : index
    %c0_11 = arith.constant 0 : index
    %13 = vector.load %arg6[%c0_10, %c0_11] : memref<1x128xf32, #tpu.memory_space<vmem>>, vector<1x128xf32>
    %14 = vector.broadcast %13 : vector<1x128xf32> to vector<304x128xf32>
    %15 = arith.addf %12, %14 : vector<304x128xf32>
    %16 = tpu.iota {dimensions = array<i32: 1>} : vector<304x128xi32>
    %c12_i32 = arith.constant 12 : i32
    %17 = vector.broadcast %c12_i32 : i32 to vector<304x128xi32>
    %18 = arith.cmpi sge, %16, %17 : vector<304x128xi32>
    %c14_i32 = arith.constant 14 : i32
    %19 = vector.broadcast %c14_i32 : i32 to vector<304x128xi32>
    %20 = arith.cmpi slt, %16, %19 : vector<304x128xi32>
    %21 = arith.andi %18, %20 : vector<304x128xi1>
    %cst_12 = arith.constant 0xFF800000 : f32
    %22 = vector.broadcast %cst_12 : f32 to vector<304x128xf32>
    %23 = arith.select %21, %15, %22 : vector<304x128xi1>, vector<304x128xf32>
    %cst_13 = arith.constant dense<0xFF800000> : vector<304xf32>
    %24 = vector.multi_reduction <maximumf>, %23, %cst_13 [1] : vector<304x128xf32> to vector<304xf32>
    %25 = vector.shape_cast %24 : vector<304xf32> to vector<304x1xf32>
    %26 = vector.broadcast %25 : vector<304x1xf32> to vector<304x128xf32>
    %27 = arith.subf %23, %26 : vector<304x128xf32>
    %28 = math.exp %27 : vector<304x128xf32>
    %cst_14 = arith.constant dense<0.000000e+00> : vector<304xf32>
    %29 = vector.multi_reduction <add>, %28, %cst_14 [1] : vector<304x128xf32> to vector<304xf32>
    %30 = vector.shape_cast %29 : vector<304xf32> to vector<304x1xf32>
    %31 = tpu.reciprocal %30 {approx = true} : vector<304x1xf32> -> vector<304x1xf32>
    %32 = vector.broadcast %31 : vector<304x1xf32> to vector<304x128xf32>
    %33 = arith.mulf %28, %32 : vector<304x128xf32>
    %c2_i32 = arith.constant 2 : i32
    %34 = tpu.dynamic_rotate %33 by %c2_i32 dim 1 : vector<304x128xf32>, i32 -> vector<304x128xf32>
    %c14_i32_15 = arith.constant 14 : i32
    %35 = vector.broadcast %c14_i32_15 : i32 to vector<304x128xi32>
    %36 = arith.cmpi slt, %16, %35 : vector<304x128xi32>
    %37 = arith.select %36, %15, %34 : vector<304x128xi1>, vector<304x128xf32>
    %38 = arith.truncf %37 : vector<304x128xf32> to vector<304x128xbf16>
    %c0_16 = arith.constant 0 : index
    %c0_17 = arith.constant 0 : index
    %c0_18 = arith.constant 0 : index
    %39 = vector.load %arg7[%c0_16, %c0_17, %c0_18] : memref<1x304x128xbf16, #tpu.memory_space<vmem>>, vector<1x304x128xbf16>
    %40 = vector.shape_cast %39 : vector<1x304x128xbf16> to vector<304x128xbf16>
    %41 = vector.shape_cast %38 : vector<304x128xbf16> to vector<1x304x128xbf16>
    tpu.vector_store %arg7[%c0_16, %c0_17, %c0_18], %41 {strides = array<i32>} : memref<1x304x128xbf16, #tpu.memory_space<vmem>>, vector<1x304x128xbf16>,
    return
  }
  func.func @transform_0(%arg0: i32, %arg1: i32) -> (i32, i32, i32) {
    %c0_i32 = arith.constant 0 : i32
    %c0_i32_0 = arith.constant 0 : i32
    return %arg0, %arg1, %c0_i32 : i32, i32, i32
  }
  func.func @transform_1(%arg0: i32, %arg1: i32) -> (i32, i32, i32) {
    %c0_i32 = arith.constant 0 : i32
    %c0_i32_0 = arith.constant 0 : i32
    %c0_i32_1 = arith.constant 0 : i32
    return %arg0, %c0_i32, %c0_i32_0 : i32, i32, i32
  }
  func.func @transform_2(%arg0: i32, %arg1: i32) -> (i32, i32) {
    %c0_i32 = arith.constant 0 : i32
    %c0_i32_0 = arith.constant 0 : i32
    %c0_i32_1 = arith.constant 0 : i32
    return %c0_i32, %c0_i32_0 : i32, i32
  }
  func.func @transform_3(%arg0: i32, %arg1: i32) -> (i32, i32) {
    %c0_i32 = arith.constant 0 : i32
    %c0_i32_0 = arith.constant 0 : i32
    %c0_i32_1 = arith.constant 0 : i32
    return %c0_i32, %c0_i32_0 : i32, i32
  }
  func.func @transform_4(%arg0: i32, %arg1: i32) -> (i32, i32) {
    %c0_i32 = arith.constant 0 : i32
    %c0_i32_0 = arith.constant 0 : i32
    %c0_i32_1 = arith.constant 0 : i32
    return %c0_i32, %c0_i32_0 : i32, i32
  }
  func.func @transform_5(%arg0: i32, %arg1: i32) -> (i32, i32, i32) {
    %c0_i32 = arith.constant 0 : i32
    %c0_i32_0 = arith.constant 0 : i32
    return %arg0, %arg1, %c0_i32 : i32, i32, i32
  }
}

</mosaic_0001>

<llo_original>
// kernel: tpu_custom_call.1
$region0: #{tpu_custom_call.1}
  #allocation0 [shape = 'u32[]', space=smem, size = 0x4, offset = 0x4, fixed_abs, tag = 'smem constant byte address 0x4 - core index']
  #allocation1 [shape = 'u32[144,128]{1,0:T(1,128)}', space=vmem, size = 0x12000, scoped, tag = 'internal scratch']
  %s0 = inlined_call_operand.hbm [shape: f32[2,304,128], index: 0, kind: input, shape index: {}]
  %s1 = inlined_call_operand.hbm [shape: f32[2,1,128], index: 1, kind: input, shape index: {}]
  %s2 = inlined_call_operand.hbm [shape: bf16[128,128], index: 2, kind: input, shape index: {}]
  %s3 = inlined_call_operand.hbm [shape: bf16[128,128], index: 3, kind: input, shape index: {}]
  %s4 = inlined_call_operand.vmem [shape: f32[1,128], index: 4, kind: input, shape index: {}]
  %s5 = inlined_call_operand.hbm [shape: bf16[2,304,128], index: 5, kind: output, shape index: {}]
  %s6 = sld [smem:[#allocation0]]
  $region69: #{tpu_custom_call.1} parent=0
    _
  %s8 = ssub.s32 1, %s6
  %s9 = scalar_select 0, %s8, %s6
  $region1: #{tpu_custom_call.1} parent=0
    #allocation2 [shape = 'u8[311296]{0}', space=vmem, size = 0x4c000, scoped, tag = 'input window, operand 0']
    #allocation3 [shape = 's32[2]{0}', space=sflag, size = 0x8, scoped, tag = 'scoped memory for tpu_custom_call.1']
    #allocation4 [shape = 's32[2]{0}', space=sflag, size = 0x8, scoped, tag = 'scoped memory for tpu_custom_call.1']
    #allocation5 [shape = 'u8[1024]{0}', space=vmem, size = 0x400, scoped, tag = 'input window, operand 1']
    #allocation6 [shape = 's32[2]{0}', space=sflag, size = 0x8, scoped, tag = 'scoped memory for tpu_custom_call.1']
    #allocation7 [shape = 'u8[32768]{0}', space=vmem, size = 0x8000, scoped, tag = 'input window, operand 2, single buffered']
    #allocation8 [shape = 'u8[32768]{0}', space=vmem, size = 0x8000, scoped, tag = 'input window, operand 3, single buffered']
    #allocation9 [shape = 's32[1]{0}', space=sflag, size = 0x4, scoped, tag = 'scoped memory for tpu_custom_call.1']
    #allocation10 [shape = 'u8[155648]{0}', space=vmem, size = 0x26000, scoped, tag = 'output window, operand 0']
    %10 = vsyncpa [#allocation3], 0
    %s11 = scalar_lea.sflag [#allocation3], 1
    %12 = vsyncpa %s11, 0
    %13 = vsyncpa [#allocation6], 0
    %s14 = scalar_lea.sflag [#allocation6], 1
    %15 = vsyncpa %s14, 0
    %16 = vsyncpa [#allocation9], 0
    %17 = vsyncpa [#allocation4], 0
    %s18 = scalar_lea.sflag [#allocation4], 1
    %19 = vsyncpa %s18, 0
    loop: start=0, step=1, limit=4
    $region2: #{tpu_custom_call.1} parent=1 // loop_pre_header
      _
    $region3: #{tpu_custom_call.1} parent=1 // loop_header
      %s21 = sphi 0, %s25
      %p22 = scmp.ge.s32.totalorder %s21, 4
      %s28 = sphi 0, %s40
      %s29 = sphi 0, %s36
      %s30 = sphi 0, %s28
      %s31 = sphi 0, %s29
      %s32 = sphi 0, %s30
      %s33 = sphi 0, %s31
      %s45 = sphi 0, %s47
      %s48 = sphi 0, %s45
      %s49 = sphi 0, %s48
      %s65 = sphi 0, %s49
      %s71 = sphi 0, %s73
      %s74 = sphi 0, %s71
      %s75 = sphi 0, %s74
      %s91 = sphi 0, %s75
      %s95 = sphi 0, %s95
      %s97 = sphi 0, %s95
      %s98 = sphi 0, %s97
      %s112 = sphi 0, %s98
      %s116 = sphi 0, %s116
      %s118 = sphi 0, %s116
      %s119 = sphi 0, %s118
      %s133 = sphi 0, %s119
      %s137 = sphi 0, %s137
      %s139 = sphi 0, %s137
      %s140 = sphi 0, %s139
      %s154 = sphi 0, %s140
      %s162 = sphi 0, %s164
      %s165 = sphi 0, %s162
      %s166 = sphi 0, %s165
      %s182 = sphi 0, %s166
    $region4: #{tpu_custom_call.1} parent=1 // loop_header_branch
      %24 = sbr.rel (%p22) target = $region8
    $region5: #{tpu_custom_call.1} parent=1 // loop_body
      %s26 = ssub.s32 %s21, 1
      %s27 = ssub.s32 %s21, 2
      %s34 = sadd.s32 1, %s29
      %p35 = scmp.ge.s32.totalorder %s34, 1
      %s36 = scalar_select %p35, 0, %s34
      %s37 = sadd.s32 1, %s28
      %s38 = scalar_select %p35, %s37, %s28
      %p39 = scmp.ge.s32.totalorder %s38, 2
      %s40 = scalar_select %p39, 0, %s38
      %s41 = ssub.s32 %s28, %s40
      %s42 = ssub.s32 %s29, %s36
      %s43 = sor.u32 %s41, %s42
      %p44 = scmp.eq.s32.totalorder %s43, 0
      %s46 = sadd.s32 %s45, 1
      %s47 = scalar_select %p44, %s45, %s46
      %p50 = pneg %p44
      %p51 = scmp.eq.s32.totalorder %s21, 1
      %p52 = por %p50, %p51
      %p53 = scmp.ne.s32.totalorder %s45, %s48
      %p54 = scmp.eq.s32.totalorder %s21, 0
      %p55 = por %p53, %p54
      %p56 = scmp.ne.s32.totalorder %s45, %s48
      %p57 = scmp.eq.s32.totalorder %s26, 1
      %p58 = por %p56, %p57
      %p59 = scmp.ne.s32.totalorder %s48, %s49
      %p60 = scmp.eq.s32.totalorder %s26, 0
      %p61 = por %p59, %p60
      %p62 = scmp.ne.s32.totalorder %s48, %s49
      %p63 = scmp.eq.s32.totalorder %s27, 1
      %p64 = por %p62, %p63
      %p66 = scmp.ne.s32.totalorder %s49, %s65
      %p67 = scmp.eq.s32.totalorder %s27, 0
      %p68 = por %p66, %p67
      %s69 = ssub.s32 %s28, %s40
      %p70 = scmp.eq.s32.totalorder %s69, 0
      %s72 = sadd.s32 %s71, 1
      %s73 = scalar_select %p70, %s71, %s72
      %p76 = pneg %p70
      %p77 = scmp.eq.s32.totalorder %s21, 1
      %p78 = por %p76, %p77
      %p79 = scmp.ne.s32.totalorder %s71, %s74
      %p80 = scmp.eq.s32.totalorder %s21, 0
      %p81 = por %p79, %p80
      %p82 = scmp.ne.s32.totalorder %s71, %s74
      %p83 = scmp.eq.s32.totalorder %s26, 1
      %p84 = por %p82, %p83
      %p85 = scmp.ne.s32.totalorder %s74, %s75
      %p86 = scmp.eq.s32.totalorder %s26, 0
      %p87 = por %p85, %p86
      %p88 = scmp.ne.s32.totalorder %s74, %s75
      %p89 = scmp.eq.s32.totalorder %s27, 1
      %p90 = por %p88, %p89
      %p92 = scmp.ne.s32.totalorder %s75, %s91
      %p93 = scmp.eq.s32.totalorder %s27, 0
      %p94 = por %p92, %p93
      %s96 = sadd.s32 %s95, 1
      %p99 = scmp.eq.s32.totalorder %s21, 1
      %p100 = scmp.ne.s32.totalorder %s95, %s97
      %p101 = scmp.eq.s32.totalorder %s21, 0
      %p102 = por %p100, %p101
      %p103 = scmp.ne.s32.totalorder %s95, %s97
      %p104 = scmp.eq.s32.totalorder %s26, 1
      %p105 = por %p103, %p104
      %p106 = scmp.ne.s32.totalorder %s97, %s98
      %p107 = scmp.eq.s32.totalorder %s26, 0
      %p108 = por %p106, %p107
      %p109 = scmp.ne.s32.totalorder %s97, %s98
      %p110 = scmp.eq.s32.totalorder %s27, 1
      %p111 = por %p109, %p110
      %p113 = scmp.ne.s32.totalorder %s98, %s112
      %p114 = scmp.eq.s32.totalorder %s27, 0
      %p115 = por %p113, %p114
      %s117 = sadd.s32 %s116, 1
      %p120 = scmp.eq.s32.totalorder %s21, 1
      %p121 = scmp.ne.s32.totalorder %s116, %s118
      %p122 = scmp.eq.s32.totalorder %s21, 0
      %p123 = por %p121, %p122
      %p124 = scmp.ne.s32.totalorder %s116, %s118
      %p125 = scmp.eq.s32.totalorder %s26, 1
      %p126 = por %p124, %p125
      %p127 = scmp.ne.s32.totalorder %s118, %s119
      %p128 = scmp.eq.s32.totalorder %s26, 0
      %p129 = por %p127, %p128
      %p130 = scmp.ne.s32.totalorder %s118, %s119
      %p131 = scmp.eq.s32.totalorder %s27, 1
      %p132 = por %p130, %p131
      %p134 = scmp.ne.s32.totalorder %s119, %s133
      %p135 = scmp.eq.s32.totalorder %s27, 0
      %p136 = por %p134, %p135
      %s138 = sadd.s32 %s137, 1
      %p141 = scmp.eq.s32.totalorder %s21, 1
      %p142 = scmp.ne.s32.totalorder %s137, %s139
      %p143 = scmp.eq.s32.totalorder %s21, 0
      %p144 = por %p142, %p143
      %p145 = scmp.ne.s32.totalorder %s137, %s139
      %p146 = scmp.eq.s32.totalorder %s26, 1
      %p147 = por %p145, %p146
      %p148 = scmp.ne.s32.totalorder %s139, %s140
      %p149 = scmp.eq.s32.totalorder %s26, 0
      %p150 = por %p148, %p149
      %p151 = scmp.ne.s32.totalorder %s139, %s140
      %p152 = scmp.eq.s32.totalorder %s27, 1
      %p153 = por %p151, %p152
      %p155 = scmp.ne.s32.totalorder %s140, %s154
      %p156 = scmp.eq.s32.totalorder %s27, 0
      %p157 = por %p155, %p156
      %s158 = ssub.s32 %s28, %s40
      %s159 = ssub.s32 %s29, %s36
      %s160 = sor.u32 %s158, %s159
      %p161 = scmp.eq.s32.totalorder %s160, 0
      %s163 = sadd.s32 %s162, 1
      %s164 = scalar_select %p161, %s162, %s163
      %p167 = pneg %p161
      %p168 = scmp.eq.s32.totalorder %s21, 1
      %p169 = por %p167, %p168
      %p170 = scmp.ne.s32.totalorder %s162, %s165
      %p171 = scmp.eq.s32.totalorder %s21, 0
      %p172 = por %p170, %p171
      %p173 = scmp.ne.s32.totalorder %s162, %s165
      %p174 = scmp.eq.s32.totalorder %s26, 1
      %p175 = por %p173, %p174
      %p176 = scmp.ne.s32.totalorder %s165, %s166
      %p177 = scmp.eq.s32.totalorder %s26, 0
      %p178 = por %p176, %p177
      %p179 = scmp.ne.s32.totalorder %s165, %s166
      %p180 = scmp.eq.s32.totalorder %s27, 1
      %p181 = por %p179, %p180
      %p183 = scmp.ne.s32.totalorder %s166, %s182
      %p184 = scmp.eq.s32.totalorder %s27, 0
      %p185 = por %p183, %p184
      %p186 = scmp.le.s32.totalorder 1, %s21
      %p187 = scmp.lt.s32.totalorder %s21, 3
      %p188 = pnand %p186, %p187
      %p189 = pneg %p188
      // Predicated region
      $region9: #{tpu_custom_call.1} parent=5 // pred_check
        _
      $region10: #{tpu_custom_call.1} parent=5 // pred_check_branch
        %191 = sbr.rel (%p188) target = $region12
      $region11: #{tpu_custom_call.1} parent=5 // pred_region
        %s192 = ssub.s32 %s21, 1
        // Predicated region
        $region13: #{tpu_custom_call.1} parent=11 // pred_check
          %p193 = pneg %p108
        $region14: #{tpu_custom_call.1} parent=11 // pred_check_branch
          %195 = sbr.rel (%p193) target = $region16
        $region15: #{tpu_custom_call.1} parent=11 // pred_region
          %s197 = ssub.s32 1024, 1024
          %198 = vsyncadd [#allocation6], %s197
          %s199 = sshll.u32 [#allocation7], 4
          %s200 = int_to_ptr.vmem [resolvable:$true] %s199
          %205 = dma.hbm_to_vmem [thread:$0]  %s2, 1024, %s200, [#allocation6], 64, 64, 4
        $region16: #{tpu_custom_call.1} parent=11 // pred_fallthru
          _
        // Predicated region
        $region17: #{tpu_custom_call.1} parent=11 // pred_check
          %p206 = pneg %p129
        $region18: #{tpu_custom_call.1} parent=11 // pred_check_branch
          %208 = sbr.rel (%p206) target = $region20
        $region19: #{tpu_custom_call.1} parent=11 // pred_region
          %s210 = ssub.s32 1024, 1024
          %211 = vsyncadd [#allocation9], %s210
          %s212 = sshll.u32 [#allocation8], 4
          %s213 = int_to_ptr.vmem [resolvable:$true] %s212
          %218 = dma.hbm_to_vmem [thread:$0]  %s3, 1024, %s213, [#allocation9], 64, 64, 4
        $region20: #{tpu_custom_call.1} parent=11 // pred_fallthru
          _
        // Predicated region
        $region21: #{tpu_custom_call.1} parent=11 // pred_check
          %p219 = pneg %p150
        $region22: #{tpu_custom_call.1} parent=11 // pred_check_branch
          %221 = sbr.rel (%p219) target = $region24
        $region23: #{tpu_custom_call.1} parent=11 // pred_region
          _
        $region24: #{tpu_custom_call.1} parent=11 // pred_fallthru
          _
      $region12: #{tpu_custom_call.1} parent=5 // pred_fallthru
        _
      %p222 = scmp.lt.s32.totalorder %s21, 2
      // Predicated region
      $region25: #{tpu_custom_call.1} parent=5 // pred_check
        %p223 = pneg %p222
      $region26: #{tpu_custom_call.1} parent=5 // pred_check_branch
        %225 = sbr.rel (%p223) target = $region28
      $region27: #{tpu_custom_call.1} parent=5 // pred_region
        // Predicated region
        $region29: #{tpu_custom_call.1} parent=27 // pred_check
          %p226 = pneg %p55
        $region30: #{tpu_custom_call.1} parent=27 // pred_check_branch
          %228 = sbr.rel (%p226) target = $region32
        $region31: #{tpu_custom_call.1} parent=27 // pred_region
          %s229 = sand.u32 %s45, 1
          %s230 = scalar_lea.sflag [#allocation3], %s229
          %s231 = sand.u32 %s45, 1
          %s232 = smul.addr %s231, 304
          %s233 = scalar_lea.vmem [#allocation2], %s232
          %s234 = smul.u32 38, %s29
          %s236 = ssub.s32 4864, 4864
          %237 = vsyncadd %s230, %s236
          %s238 = smul.addr %s28, 38
          %s239 = sadd.s32 %s234, %s238
          %s240 = smul.addr %s239, 128
          %s241 = scalar_lea.hbm %s0, %s240
          %s242 = sshll.u32 %s233, 4
          %s243 = int_to_ptr.vmem [resolvable:$true] %s242
          %248 = dma.hbm_to_vmem [thread:$0]  %s241, 4864, %s243, %s230, 128, 128, 8
        $region32: #{tpu_custom_call.1} parent=27 // pred_fallthru
          _
        // Predicated region
        $region33: #{tpu_custom_call.1} parent=27 // pred_check
          %p249 = pneg %p81
        $region34: #{tpu_custom_call.1} parent=27 // pred_check_branch
          %251 = sbr.rel (%p249) target = $region36
        $region35: #{tpu_custom_call.1} parent=27 // pred_region
          %s252 = sand.u32 %s21, 1
          %s253 = scalar_lea.sflag [#allocation6], %s252
          %s254 = sand.u32 %s71, 1
          %s255 = scalar_lea.vmem [#allocation5], %s254
          %s257 = ssub.s32 16, 16
          %258 = vsyncadd %s253, %s257
          %s259 = smul.addr %s28, 16
          %s260 = scalar_lea.hbm %s1, %s259
          %s262 = sshll.u32 %s255, 4
          %s263 = int_to_ptr.vmem [resolvable:$true] %s262
          %265 = dma.hbm_to_vmem [thread:$0]  %s260, 16, %s263, %s253
        $region36: #{tpu_custom_call.1} parent=27 // pred_fallthru
          _
      $region28: #{tpu_custom_call.1} parent=5 // pred_fallthru
        _
      %p266 = scmp.le.s32.totalorder 1, %s21
      %p267 = scmp.lt.s32.totalorder %s21, 3
      %p268 = pnand %p266, %p267
      %p269 = pneg %p268
      // Predicated region
      $region37: #{tpu_custom_call.1} parent=5 // pred_check
        _
      $region38: #{tpu_custom_call.1} parent=5 // pred_check_branch
        %271 = sbr.rel (%p268) target = $region40
      $region39: #{tpu_custom_call.1} parent=5 // pred_region
        %s272 = ssub.s32 %s21, 1
        %s273 = sand.u32 %s48, 1
        %s274 = scalar_lea.sflag [#allocation3], %s273
        %s275 = sand.u32 %s48, 1
        %s276 = smul.addr %s275, 304
        %s277 = scalar_lea.vmem [#allocation2], %s276
        // Predicated region
        $region41: #{tpu_custom_call.1} parent=39 // pred_check
          %p278 = pneg %p61
        $region42: #{tpu_custom_call.1} parent=39 // pred_check_branch
          %280 = sbr.rel (%p278) target = $region44
        $region43: #{tpu_custom_call.1} parent=39 // pred_region
          %281 = dma.done %s274, 4864
        $region44: #{tpu_custom_call.1} parent=39 // pred_fallthru
          _
        %s282 = sand.u32 %s26, 1
        %s283 = scalar_lea.sflag [#allocation6], %s282
        %s284 = sand.u32 %s74, 1
        %s285 = scalar_lea.vmem [#allocation5], %s284
        // Predicated region
        $region45: #{tpu_custom_call.1} parent=39 // pred_check
          %p286 = pneg %p87
        $region46: #{tpu_custom_call.1} parent=39 // pred_check_branch
          %288 = sbr.rel (%p286) target = $region48
        $region47: #{tpu_custom_call.1} parent=39 // pred_region
          %289 = dma.done %s283, 16
        $region48: #{tpu_custom_call.1} parent=39 // pred_fallthru
          _
        // Predicated region
        $region49: #{tpu_custom_call.1} parent=39 // pred_check
          %p290 = pneg %p108
        $region50: #{tpu_custom_call.1} parent=39 // pred_check_branch
          %292 = sbr.rel (%p290) target = $region52
        $region51: #{tpu_custom_call.1} parent=39 // pred_region
          %293 = dma.done [#allocation6], 1024
        $region52: #{tpu_custom_call.1} parent=39 // pred_fallthru
          _
        // Predicated region
        $region53: #{tpu_custom_call.1} parent=39 // pred_check
          %p294 = pneg %p129
        $region54: #{tpu_custom_call.1} parent=39 // pred_check_branch
          %296 = sbr.rel (%p294) target = $region56
        $region55: #{tpu_custom_call.1} parent=39 // pred_region
          %297 = dma.done [#allocation9], 1024
        $region56: #{tpu_custom_call.1} parent=39 // pred_fallthru
          _
        %s298 = sand.u32 %s48, 1
        %s299 = scalar_lea.sflag [#allocation3], %s298
        %s300 = sand.u32 %s48, 1
        %s301 = smul.addr %s300, 304
        %s302 = scalar_lea.vmem [#allocation2], %s301
        %p303 = pneg %p61
        %p304 = pneg %p58
        %s305 = sand.u32 %s26, 1
        %s306 = scalar_lea.sflag [#allocation6], %s305
        %s307 = sand.u32 %s74, 1
        %s308 = scalar_lea.vmem [#allocation5], %s307
        %p309 = pneg %p87
        %p310 = pneg %p84
        %p311 = pneg %p108
        %p312 = pneg %p105
        %p313 = pneg %p129
        %p314 = pneg %p126
        %p315 = pneg %p150
        %p316 = pneg %p147
        %p317 = pneg %p178
        %p318 = pneg %p175
        %s319 = sand.u32 %s165, 1
        %s320 = scalar_lea.sflag [#allocation4], %s319
        %s321 = sand.u32 %s165, 1
        %s322 = smul.addr %s321, 152
        %s323 = scalar_lea.vmem [#allocation10], %s322
        %s324 = smul.u32 38, %s31
        %s325 = smul.u32 38, %s31
        %v327 = vld [vmem:[%s277] sm:$0xff]
        %v328 = vld [vmem:[%s277 + $0x8] sm:$0xff]
        %v329 = vld [vmem:[%s277 + $0x10] sm:$0xff]
        %v330 = vld [vmem:[%s277 + $0x18] sm:$0xff]
        %v331 = vld [vmem:[%s277 + $0x20] sm:$0xff]
        %v332 = vld [vmem:[%s277 + $0x28] sm:$0xff]
        %v333 = vld [vmem:[%s277 + $0x30] sm:$0xff]
        %v334 = vld [vmem:[%s277 + $0x38] sm:$0xff]
        %v335 = vld [vmem:[%s277 + $0x40] sm:$0xff]
        %v336 = vld [vmem:[%s277 + $0x48] sm:$0xff]
        %v337 = vld [vmem:[%s277 + $0x50] sm:$0xff]
        %v338 = vld [vmem:[%s277 + $0x58] sm:$0xff]
        %v339 = vld [vmem:[%s277 + $0x60] sm:$0xff]
        %v340 = vld [vmem:[%s277 + $0x68] sm:$0xff]
        %v341 = vld [vmem:[%s277 + $0x70] sm:$0xff]
        %v342 = vld [vmem:[%s277 + $0x78] sm:$0xff]
        %v343 = vld [vmem:[%s277 + $0x80] sm:$0xff]
        %v344 = vld [vmem:[%s277 + $0x88] sm:$0xff]
        %v345 = vld [vmem:[%s277 + $0x90] sm:$0xff]
        %v346 = vld [vmem:[%s277 + $0x98] sm:$0xff]
        %v347 = vld [vmem:[%s277 + $0xa0] sm:$0xff]
        %v348 = vld [vmem:[%s277 + $0xa8] sm:$0xff]
        %v349 = vld [vmem:[%s277 + $0xb0] sm:$0xff]
        %v350 = vld [vmem:[%s277 + $0xb8] sm:$0xff]
        %v351 = vld [vmem:[%s277 + $0xc0] sm:$0xff]
        %v352 = vld [vmem:[%s277 + $0xc8] sm:$0xff]
        %v353 = vld [vmem:[%s277 + $0xd0] sm:$0xff]
        %v354 = vld [vmem:[%s277 + $0xd8] sm:$0xff]
        %v355 = vld [vmem:[%s277 + $0xe0] sm:$0xff]
        %v356 = vld [vmem:[%s277 + $0xe8] sm:$0xff]
        %v357 = vld [vmem:[%s277 + $0xf0] sm:$0xff]
        %v358 = vld [vmem:[%s277 + $0xf8] sm:$0xff]
        %v359 = vld [vmem:[%s277 + $0x100] sm:$0xff]
        %v360 = vld [vmem:[%s277 + $0x108] sm:$0xff]
        %v361 = vld [vmem:[%s277 + $0x110] sm:$0xff]
        %v362 = vld [vmem:[%s277 + $0x118] sm:$0xff]
        %v363 = vld [vmem:[%s277 + $0x120] sm:$0xff]
        %v364 = vld [vmem:[%s277 + $0x128] sm:$0xff]
        %v365 = vpack.c.bf16 %v328, %v327
        %v366 = vpack.c.bf16 %v330, %v329
        %v367 = vpack.c.bf16 %v332, %v331
        %v368 = vpack.c.bf16 %v334, %v333
        %v369 = vpack.c.bf16 %v336, %v335
        %v370 = vpack.c.bf16 %v338, %v337
        %v371 = vpack.c.bf16 %v340, %v339
        %v372 = vpack.c.bf16 %v342, %v341
        %v373 = vpack.c.bf16 %v344, %v343
        %v374 = vpack.c.bf16 %v346, %v345
        %v375 = vpack.c.bf16 %v348, %v347
        %v376 = vpack.c.bf16 %v350, %v349
        %v377 = vpack.c.bf16 %v352, %v351
        %v378 = vpack.c.bf16 %v354, %v353
        %v379 = vpack.c.bf16 %v356, %v355
        %v380 = vpack.c.bf16 %v358, %v357
        %v381 = vpack.c.bf16 %v360, %v359
        %v382 = vpack.c.bf16 %v362, %v361
        %v383 = vpack.c.bf16 %v364, %v363
        %v384 = vld [vmem:[%s285] sm:$0x1]
        %v386 = vlaneseq
        %v387 = vshrl.u32 %v386, 7
        %v388 = vsub.s32 0, %v387
        %v389 = vrot.slane %v384, %v388
        %v391 = vmul.f32 %v327, %v389
        %v392 = vmul.f32 %v328, %v389
        %v393 = vmul.f32 %v329, %v389
        %v394 = vmul.f32 %v330, %v389
        %v395 = vmul.f32 %v331, %v389
        %v396 = vmul.f32 %v332, %v389
        %v397 = vmul.f32 %v333, %v389
        %v398 = vmul.f32 %v334, %v389
        %v399 = vmul.f32 %v335, %v389
        %v400 = vmul.f32 %v336, %v389
        %v401 = vmul.f32 %v337, %v389
        %v402 = vmul.f32 %v338, %v389
        %v403 = vmul.f32 %v339, %v389
        %v404 = vmul.f32 %v340, %v389
        %v405 = vmul.f32 %v341, %v389
        %v406 = vmul.f32 %v342, %v389
        %v407 = vmul.f32 %v343, %v389
        %v408 = vmul.f32 %v344, %v389
        %v409 = vmul.f32 %v345, %v389
        %v410 = vmul.f32 %v346, %v389
        %v411 = vmul.f32 %v347, %v389
        %v412 = vmul.f32 %v348, %v389
        %v413 = vmul.f32 %v349, %v389
        %v414 = vmul.f32 %v350, %v389
        %v415 = vmul.f32 %v351, %v389
        %v416 = vmul.f32 %v352, %v389
        %v417 = vmul.f32 %v353, %v389
        %v418 = vmul.f32 %v354, %v389
        %v419 = vmul.f32 %v355, %v389
        %v420 = vmul.f32 %v356, %v389
        %v421 = vmul.f32 %v357, %v389
        %v422 = vmul.f32 %v358, %v389
        %v423 = vmul.f32 %v359, %v389
        %v424 = vmul.f32 %v360, %v389
        %v425 = vmul.f32 %v361, %v389
        %v426 = vmul.f32 %v362, %v389
        %v427 = vmul.f32 %v363, %v389
        %v428 = vmul.f32 %v364, %v389
        %v429 = vpack.c.bf16 %v392, %v391
        %v430 = vpack.c.bf16 %v394, %v393
        %v431 = vpack.c.bf16 %v396, %v395
        %v432 = vpack.c.bf16 %v398, %v397
        %v433 = vpack.c.bf16 %v400, %v399
        %v434 = vpack.c.bf16 %v402, %v401
        %v435 = vpack.c.bf16 %v404, %v403
        %v436 = vpack.c.bf16 %v406, %v405
        %v437 = vpack.c.bf16 %v408, %v407
        %v438 = vpack.c.bf16 %v410, %v409
        %v439 = vpack.c.bf16 %v412, %v411
        %v440 = vpack.c.bf16 %v414, %v413
        %v441 = vpack.c.bf16 %v416, %v415
        %v442 = vpack.c.bf16 %v418, %v417
        %v443 = vpack.c.bf16 %v420, %v419
        %v444 = vpack.c.bf16 %v422, %v421
        %v445 = vpack.c.bf16 %v424, %v423
        %v446 = vpack.c.bf16 %v426, %v425
        %v447 = vpack.c.bf16 %v428, %v427
        %v448 = vld [vmem:[#allocation7] sm:$0xf]
        %v449 = vld [vmem:[#allocation7 + $0x4] sm:$0xf]
        %v450 = vld [vmem:[#allocation7 + $0x8] sm:$0xf]
        %v451 = vld [vmem:[#allocation7 + $0xc] sm:$0xf]
        %v452 = vld [vmem:[#allocation7 + $0x10] sm:$0xf]
        %v453 = vld [vmem:[#allocation7 + $0x14] sm:$0xf]
        %v454 = vld [vmem:[#allocation7 + $0x18] sm:$0xf]
        %v455 = vld [vmem:[#allocation7 + $0x1c] sm:$0xf]
        %v456 = vld [vmem:[#allocation7 + $0x20] sm:$0xf]
        %v457 = vld [vmem:[#allocation7 + $0x24] sm:$0xf]
        %v458 = vld [vmem:[#allocation7 + $0x28] sm:$0xf]
        %v459 = vld [vmem:[#allocation7 + $0x2c] sm:$0xf]
        %v460 = vld [vmem:[#allocation7 + $0x30] sm:$0xf]
        %v461 = vld [vmem:[#allocation7 + $0x34] sm:$0xf]
        %v462 = vld [vmem:[#allocation7 + $0x38] sm:$0xf]
        %v463 = vld [vmem:[#allocation7 + $0x3c] sm:$0xf]
        %v464 = vld [vmem:[#allocation8] sm:$0xf]
        %v465 = vld [vmem:[#allocation8 + $0x4] sm:$0xf]
        %v466 = vld [vmem:[#allocation8 + $0x8] sm:$0xf]
        %v467 = vld [vmem:[#allocation8 + $0xc] sm:$0xf]
        %v468 = vld [vmem:[#allocation8 + $0x10] sm:$0xf]
        %v469 = vld [vmem:[#allocation8 + $0x14] sm:$0xf]
        %v470 = vld [vmem:[#allocation8 + $0x18] sm:$0xf]
        %v471 = vld [vmem:[#allocation8 + $0x1c] sm:$0xf]
        %v472 = vld [vmem:[#allocation8 + $0x20] sm:$0xf]
        %v473 = vld [vmem:[#allocation8 + $0x24] sm:$0xf]
        %v474 = vld [vmem:[#allocation8 + $0x28] sm:$0xf]
        %v475 = vld [vmem:[#allocation8 + $0x2c] sm:$0xf]
        %v476 = vld [vmem:[#allocation8 + $0x30] sm:$0xf]
        %v477 = vld [vmem:[#allocation8 + $0x34] sm:$0xf]
        %v478 = vld [vmem:[#allocation8 + $0x38] sm:$0xf]
        %v479 = vld [vmem:[#allocation8 + $0x3c] sm:$0xf]
        %v496 = vunpack.c.l.b16 %v464
        %v497 = vunpack.c.l.b16 %v465
        %v498 = vunpack.c.l.b16 %v466
        %v499 = vunpack.c.l.b16 %v467
        %v500 = vunpack.c.l.b16 %v468
        %v501 = vunpack.c.l.b16 %v469
        %v502 = vunpack.c.l.b16 %v470
        %v503 = vunpack.c.l.b16 %v471
        %v504 = vunpack.c.l.b16 %v472
        %v505 = vunpack.c.l.b16 %v473
        %v506 = vunpack.c.l.b16 %v474
        %v507 = vunpack.c.l.b16 %v475
        %v508 = vunpack.c.l.b16 %v476
        %v509 = vunpack.c.l.b16 %v477
        %v510 = vunpack.c.l.b16 %v478
        %v511 = vunpack.c.l.b16 %v479
        %v512 = vpack.c.b16 %v497, %v496
        %v513 = vpack.c.b16 %v499, %v498
        %v514 = vpack.c.b16 %v501, %v500
        %v515 = vpack.c.b16 %v503, %v502
        %v516 = vpack.c.b16 %v505, %v504
        %v517 = vpack.c.b16 %v507, %v506
        %v518 = vpack.c.b16 %v509, %v508
        %v519 = vpack.c.b16 %v511, %v510
        %528 = vmatprep.subr.bf16.mxu0 0
        %529 = vmatpush1.bf16.msra.mxu0 %v519
        %530 = vmatprep.subr.bf16.mxu0 0
        %531 = vmatpush1.bf16.msra.mxu0 %v518
        %532 = vmatprep.subr.bf16.mxu0 0
        %533 = vmatpush1.bf16.msra.mxu0 %v517
        %534 = vmatprep.subr.bf16.mxu0 0
        %535 = vmatpush1.bf16.msra.mxu0 %v516
        %536 = vmatprep.subr.bf16.mxu0 0
        %537 = vmatpush1.bf16.msra.mxu0 %v515
        %538 = vmatprep.subr.bf16.mxu0 0
        %539 = vmatpush1.bf16.msra.mxu0 %v514
        %540 = vmatprep.subr.bf16.mxu0 0
        %541 = vmatpush1.bf16.msra.mxu0 %v513
        %542 = vmatprep.subr.bf16.mxu0 0
        %543 = vmatpush1.bf16.msra.mxu0 %v512
        %544 = vmatprep.subr.bf16.mxu0 0
        %545 = vmatpush2.bf16.msra.mxu0 0
        %546 = vmatprep.subr.bf16.mxu0 0
        %547 = vmatpush2.bf16.msra.mxu0 0
        %548 = vmatprep.subr.bf16.mxu0 0
        %549 = vmatpush2.bf16.msra.mxu0 0
        %550 = vmatprep.subr.bf16.mxu0 0
        %551 = vmatpush2.bf16.msra.mxu0 0
        %552 = vmatprep.subr.bf16.mxu0 0
        %553 = vmatpush2.bf16.msra.mxu0 0
        %554 = vmatprep.subr.bf16.mxu0 0
        %555 = vmatpush2.bf16.msra.mxu0 0
        %556 = vmatprep.subr.bf16.mxu0 0
        %557 = vmatpush2.bf16.msra.mxu0 0
        %558 = vmatprep.subr.bf16.mxu0 0
        %559 = vmatpush2.bf16.msra.mxu0 0
        %560 = vmatprep.mubr.bf16.mxu0 0
        %561 = vmatmul.mubr.bf16.gmra.mxu0 %v429
        %v562 = vpop.f32.mrf.mxu0
        %v563 = vadd.f32 0.0, %v562
        %v564 = vpop.f32.mrf.mxu0
        %v565 = vpop.f32.mrf.mxu0
        %v566 = vadd.f32 0.0, %v565
        %v567 = vpop.f32.mrf.mxu0
        %568 = vmatprep.mubr.bf16.mxu0 0
        %569 = vmatmul.mubr.bf16.gmra.mxu0 %v430
        %v570 = vpop.f32.mrf.mxu0
        %v571 = vadd.f32 0.0, %v570
        %v572 = vpop.f32.mrf.mxu0
        %v573 = vpop.f32.mrf.mxu0
        %v574 = vadd.f32 0.0, %v573
        %v575 = vpop.f32.mrf.mxu0
        %576 = vmatprep.mubr.bf16.mxu0 0
        %577 = vmatmul.mubr.bf16.gmra.mxu0 %v431
        %v578 = vpop.f32.mrf.mxu0
        %v579 = vadd.f32 0.0, %v578
        %v580 = vpop.f32.mrf.mxu0
        %v581 = vpop.f32.mrf.mxu0
        %v582 = vadd.f32 0.0, %v581
        %v583 = vpop.f32.mrf.mxu0
        %584 = vmatprep.mubr.bf16.mxu0 0
        %585 = vmatmul.mubr.bf16.gmra.mxu0 %v432
        %v586 = vpop.f32.mrf.mxu0
        %v587 = vadd.f32 0.0, %v586
        %v588 = vpop.f32.mrf.mxu0
        %v589 = vpop.f32.mrf.mxu0
        %v590 = vadd.f32 0.0, %v589
        %v591 = vpop.f32.mrf.mxu0
        %592 = vmatprep.mubr.bf16.mxu0 0
        %593 = vmatmul.mubr.bf16.gmra.mxu0 %v433
        %v594 = vpop.f32.mrf.mxu0
        %v595 = vadd.f32 0.0, %v594
        %v596 = vpop.f32.mrf.mxu0
        %v597 = vpop.f32.mrf.mxu0
        %v598 = vadd.f32 0.0, %v597
        %v599 = vpop.f32.mrf.mxu0
        %600 = vmatprep.mubr.bf16.mxu0 0
        %601 = vmatmul.mubr.bf16.gmra.mxu0 %v434
        %v602 = vpop.f32.mrf.mxu0
        %v603 = vadd.f32 0.0, %v602
        %v604 = vpop.f32.mrf.mxu0
        %v605 = vpop.f32.mrf.mxu0
        %v606 = vadd.f32 0.0, %v605
        %v607 = vpop.f32.mrf.mxu0
        %608 = vmatprep.mubr.bf16.mxu0 0
        %609 = vmatmul.mubr.bf16.gmra.mxu0 %v435
        %v610 = vpop.f32.mrf.mxu0
        %v611 = vadd.f32 0.0, %v610
        %v612 = vpop.f32.mrf.mxu0
        %v613 = vpop.f32.mrf.mxu0
        %v614 = vadd.f32 0.0, %v613
        %v615 = vpop.f32.mrf.mxu0
        %616 = vmatprep.mubr.bf16.mxu0 0
        %617 = vmatmul.mubr.bf16.gmra.mxu0 %v436
        %v618 = vpop.f32.mrf.mxu0
        %v619 = vadd.f32 0.0, %v618
        %v620 = vpop.f32.mrf.mxu0
        %v621 = vpop.f32.mrf.mxu0
        %v622 = vadd.f32 0.0, %v621
        %v623 = vpop.f32.mrf.mxu0
        %624 = vmatprep.mubr.bf16.mxu0 0
        %625 = vmatmul.mubr.bf16.gmra.mxu0 %v437
        %v626 = vpop.f32.mrf.mxu0
        %v627 = vadd.f32 0.0, %v626
        %v628 = vpop.f32.mrf.mxu0
        %v629 = vpop.f32.mrf.mxu0
        %v630 = vadd.f32 0.0, %v629
        %v631 = vpop.f32.mrf.mxu0
        %632 = vmatprep.mubr.bf16.mxu0 0
        %633 = vmatmul.mubr.bf16.gmra.mxu0 %v438
        %v634 = vpop.f32.mrf.mxu0
        %v635 = vadd.f32 0.0, %v634
        %v636 = vpop.f32.mrf.mxu0
        %v637 = vpop.f32.mrf.mxu0
        %v638 = vadd.f32 0.0, %v637
        %v639 = vpop.f32.mrf.mxu0
        %640 = vmatprep.mubr.bf16.mxu0 0
        %641 = vmatmul.mubr.bf16.gmra.mxu0 %v439
        %v642 = vpop.f32.mrf.mxu0
        %v643 = vadd.f32 0.0, %v642
        %v644 = vpop.f32.mrf.mxu0
        %v645 = vpop.f32.mrf.mxu0
        %v646 = vadd.f32 0.0, %v645
        %v647 = vpop.f32.mrf.mxu0
        %648 = vmatprep.mubr.bf16.mxu0 0
        %649 = vmatmul.mubr.bf16.gmra.mxu0 %v440
        %v650 = vpop.f32.mrf.mxu0
        %v651 = vadd.f32 0.0, %v650
        %v652 = vpop.f32.mrf.mxu0
        %v653 = vpop.f32.mrf.mxu0
        %v654 = vadd.f32 0.0, %v653
        %v655 = vpop.f32.mrf.mxu0
        %656 = vmatprep.mubr.bf16.mxu0 0
        %657 = vmatmul.mubr.bf16.gmra.mxu0 %v441
        %v658 = vpop.f32.mrf.mxu0
        %v659 = vadd.f32 0.0, %v658
        %v660 = vpop.f32.mrf.mxu0
        %v661 = vpop.f32.mrf.mxu0
        %v662 = vadd.f32 0.0, %v661
        %v663 = vpop.f32.mrf.mxu0
        %664 = vmatprep.mubr.bf16.mxu0 0
        %665 = vmatmul.mubr.bf16.gmra.mxu0 %v442
        %v666 = vpop.f32.mrf.mxu0
        %v667 = vadd.f32 0.0, %v666
        %v668 = vpop.f32.mrf.mxu0
        %v669 = vpop.f32.mrf.mxu0
        %v670 = vadd.f32 0.0, %v669
        %v671 = vpop.f32.mrf.mxu0
        %672 = vmatprep.mubr.bf16.mxu0 0
        %673 = vmatmul.mubr.bf16.gmra.mxu0 %v443
        %v674 = vpop.f32.mrf.mxu0
        %v675 = vadd.f32 0.0, %v674
        %v676 = vpop.f32.mrf.mxu0
        %v677 = vpop.f32.mrf.mxu0
        %v678 = vadd.f32 0.0, %v677
        %v679 = vpop.f32.mrf.mxu0
        %680 = vmatprep.mubr.bf16.mxu0 0
        %681 = vmatmul.mubr.bf16.gmra.mxu0 %v444
        %v682 = vpop.f32.mrf.mxu0
        %v683 = vadd.f32 0.0, %v682
        %v684 = vpop.f32.mrf.mxu0
        %v685 = vpop.f32.mrf.mxu0
        %v686 = vadd.f32 0.0, %v685
        %v687 = vpop.f32.mrf.mxu0
        %688 = vmatprep.mubr.bf16.mxu0 0
        %689 = vmatmul.mubr.bf16.gmra.mxu0 %v445
        %v690 = vpop.f32.mrf.mxu0
        %v691 = vadd.f32 0.0, %v690
        %v692 = vpop.f32.mrf.mxu0
        %v693 = vpop.f32.mrf.mxu0
        %v694 = vadd.f32 0.0, %v693
        %v695 = vpop.f32.mrf.mxu0
        %696 = vmatprep.mubr.bf16.mxu0 0
        %697 = vmatmul.mubr.bf16.gmra.mxu0 %v446
        %v698 = vpop.f32.mrf.mxu0
        %v699 = vadd.f32 0.0, %v698
        %v700 = vpop.f32.mrf.mxu0
        %v701 = vpop.f32.mrf.mxu0
        %v702 = vadd.f32 0.0, %v701
        %v703 = vpop.f32.mrf.mxu0
        %704 = vmatprep.mubr.bf16.mxu0 0
        %705 = vmatmul.mubr.bf16.gmra.mxu0 %v447
        %v706 = vpop.f32.mrf.mxu0
        %v707 = vadd.f32 0.0, %v706
        %v708 = vpop.f32.mrf.mxu0
        %v709 = vpop.f32.mrf.mxu0
        %v710 = vadd.f32 0.0, %v709
        %v711 = vpop.f32.mrf.mxu0
        %712 = vdwg.mxu0
        %v729 = vunpack.c.l.b16 %v448
        %v730 = vunpack.c.l.b16 %v449
        %v731 = vunpack.c.l.b16 %v450
        %v732 = vunpack.c.l.b16 %v451
        %v733 = vunpack.c.l.b16 %v452
        %v734 = vunpack.c.l.b16 %v453
        %v735 = vunpack.c.l.b16 %v454
        %v736 = vunpack.c.l.b16 %v455
        %v737 = vunpack.c.l.b16 %v456
        %v738 = vunpack.c.l.b16 %v457
        %v739 = vunpack.c.l.b16 %v458
        %v740 = vunpack.c.l.b16 %v459
        %v741 = vunpack.c.l.b16 %v460
        %v742 = vunpack.c.l.b16 %v461
        %v743 = vunpack.c.l.b16 %v462
        %v744 = vunpack.c.l.b16 %v463
        %v745 = vpack.c.b16 %v730, %v729
        %v746 = vpack.c.b16 %v732, %v731
        %v747 = vpack.c.b16 %v734, %v733
        %v748 = vpack.c.b16 %v736, %v735
        %v749 = vpack.c.b16 %v738, %v737
        %v750 = vpack.c.b16 %v740, %v739
        %v751 = vpack.c.b16 %v742, %v741
        %v752 = vpack.c.b16 %v744, %v743
        %761 = vmatprep.subr.bf16.mxu0 0
        %762 = vmatpush1.bf16.msra.mxu0 %v752
        %763 = vmatprep.subr.bf16.mxu0 0
        %764 = vmatpush1.bf16.msra.mxu0 %v751
        %765 = vmatprep.subr.bf16.mxu0 0
        %766 = vmatpush1.bf16.msra.mxu0 %v750
        %767 = vmatprep.subr.bf16.mxu0 0
        %768 = vmatpush1.bf16.msra.mxu0 %v749
        %769 = vmatprep.subr.bf16.mxu0 0
        %770 = vmatpush1.bf16.msra.mxu0 %v748
        %771 = vmatprep.subr.bf16.mxu0 0
        %772 = vmatpush1.bf16.msra.mxu0 %v747
        %773 = vmatprep.subr.bf16.mxu0 0
        %774 = vmatpush1.bf16.msra.mxu0 %v746
        %775 = vmatprep.subr.bf16.mxu0 0
        %776 = vmatpush1.bf16.msra.mxu0 %v745
        %777 = vmatprep.subr.bf16.mxu0 0
        %778 = vmatpush2.bf16.msra.mxu0 0
        %779 = vmatprep.subr.bf16.mxu0 0
        %780 = vmatpush2.bf16.msra.mxu0 0
        %781 = vmatprep.subr.bf16.mxu0 0
        %782 = vmatpush2.bf16.msra.mxu0 0
        %783 = vmatprep.subr.bf16.mxu0 0
        %784 = vmatpush2.bf16.msra.mxu0 0
        %785 = vmatprep.subr.bf16.mxu0 0
        %786 = vmatpush2.bf16.msra.mxu0 0
        %787 = vmatprep.subr.bf16.mxu0 0
        %788 = vmatpush2.bf16.msra.mxu0 0
        %789 = vmatprep.subr.bf16.mxu0 0
        %790 = vmatpush2.bf16.msra.mxu0 0
        %791 = vmatprep.subr.bf16.mxu0 0
        %792 = vmatpush2.bf16.msra.mxu0 0
        %793 = vmatprep.mubr.bf16.mxu0 0
        %794 = vmatmul.mubr.bf16.gmra.mxu0 %v365
        %v795 = vpop.f32.mrf.mxu0
        %v796 = vadd.f32 %v563, %v795
        %v797 = vpop.f32.mrf.mxu0
        %v798 = vpop.f32.mrf.mxu0
        %v799 = vadd.f32 %v566, %v798
        %v800 = vpop.f32.mrf.mxu0
        %801 = vmatprep.mubr.bf16.mxu0 0
        %802 = vmatmul.mubr.bf16.gmra.mxu0 %v366
        %v803 = vpop.f32.mrf.mxu0
        %v804 = vadd.f32 %v571, %v803
        %v805 = vpop.f32.mrf.mxu0
        %v806 = vpop.f32.mrf.mxu0
        %v807 = vadd.f32 %v574, %v806
        %v808 = vpop.f32.mrf.mxu0
        %809 = vmatprep.mubr.bf16.mxu0 0
        %810 = vmatmul.mubr.bf16.gmra.mxu0 %v367
        %v811 = vpop.f32.mrf.mxu0
        %v812 = vadd.f32 %v579, %v811
        %v813 = vpop.f32.mrf.mxu0
        %v814 = vpop.f32.mrf.mxu0
        %v815 = vadd.f32 %v582, %v814
        %v816 = vpop.f32.mrf.mxu0
        %817 = vmatprep.mubr.bf16.mxu0 0
        %818 = vmatmul.mubr.bf16.gmra.mxu0 %v368
        %v819 = vpop.f32.mrf.mxu0
        %v820 = vadd.f32 %v587, %v819
        %v821 = vpop.f32.mrf.mxu0
        %v822 = vpop.f32.mrf.mxu0
        %v823 = vadd.f32 %v590, %v822
        %v824 = vpop.f32.mrf.mxu0
        %825 = vmatprep.mubr.bf16.mxu0 0
        %826 = vmatmul.mubr.bf16.gmra.mxu0 %v369
        %v827 = vpop.f32.mrf.mxu0
        %v828 = vadd.f32 %v595, %v827
        %v829 = vpop.f32.mrf.mxu0
        %v830 = vpop.f32.mrf.mxu0
        %v831 = vadd.f32 %v598, %v830
        %v832 = vpop.f32.mrf.mxu0
        %833 = vmatprep.mubr.bf16.mxu0 0
        %834 = vmatmul.mubr.bf16.gmra.mxu0 %v370
        %v835 = vpop.f32.mrf.mxu0
        %v836 = vadd.f32 %v603, %v835
        %v837 = vpop.f32.mrf.mxu0
        %v838 = vpop.f32.mrf.mxu0
        %v839 = vadd.f32 %v606, %v838
        %v840 = vpop.f32.mrf.mxu0
        %841 = vmatprep.mubr.bf16.mxu0 0
        %842 = vmatmul.mubr.bf16.gmra.mxu0 %v371
        %v843 = vpop.f32.mrf.mxu0
        %v844 = vadd.f32 %v611, %v843
        %v845 = vpop.f32.mrf.mxu0
        %v846 = vpop.f32.mrf.mxu0
        %v847 = vadd.f32 %v614, %v846
        %v848 = vpop.f32.mrf.mxu0
        %849 = vmatprep.mubr.bf16.mxu0 0
        %850 = vmatmul.mubr.bf16.gmra.mxu0 %v372
        %v851 = vpop.f32.mrf.mxu0
        %v852 = vadd.f32 %v619, %v851
        %v853 = vpop.f32.mrf.mxu0
        %v854 = vpop.f32.mrf.mxu0
        %v855 = vadd.f32 %v622, %v854
        %v856 = vpop.f32.mrf.mxu0
        %857 = vmatprep.mubr.bf16.mxu0 0
        %858 = vmatmul.mubr.bf16.gmra.mxu0 %v373
        %v859 = vpop.f32.mrf.mxu0
        %v860 = vadd.f32 %v627, %v859
        %v861 = vpop.f32.mrf.mxu0
        %v862 = vpop.f32.mrf.mxu0
        %v863 = vadd.f32 %v630, %v862
        %v864 = vpop.f32.mrf.mxu0
        %865 = vmatprep.mubr.bf16.mxu0 0
        %866 = vmatmul.mubr.bf16.gmra.mxu0 %v374
        %v867 = vpop.f32.mrf.mxu0
        %v868 = vadd.f32 %v635, %v867
        %v869 = vpop.f32.mrf.mxu0
        %v870 = vpop.f32.mrf.mxu0
        %v871 = vadd.f32 %v638, %v870
        %v872 = vpop.f32.mrf.mxu0
        %873 = vmatprep.mubr.bf16.mxu0 0
        %874 = vmatmul.mubr.bf16.gmra.mxu0 %v375
        %v875 = vpop.f32.mrf.mxu0
        %v876 = vadd.f32 %v643, %v875
        %v877 = vpop.f32.mrf.mxu0
        %v878 = vpop.f32.mrf.mxu0
        %v879 = vadd.f32 %v646, %v878
        %v880 = vpop.f32.mrf.mxu0
        %881 = vmatprep.mubr.bf16.mxu0 0
        %882 = vmatmul.mubr.bf16.gmra.mxu0 %v376
        %v883 = vpop.f32.mrf.mxu0
        %v884 = vadd.f32 %v651, %v883
        %v885 = vpop.f32.mrf.mxu0
        %v886 = vpop.f32.mrf.mxu0
        %v887 = vadd.f32 %v654, %v886
        %v888 = vpop.f32.mrf.mxu0
        %889 = vmatprep.mubr.bf16.mxu0 0
        %890 = vmatmul.mubr.bf16.gmra.mxu0 %v377
        %v891 = vpop.f32.mrf.mxu0
        %v892 = vadd.f32 %v659, %v891
        %v893 = vpop.f32.mrf.mxu0
        %v894 = vpop.f32.mrf.mxu0
        %v895 = vadd.f32 %v662, %v894
        %v896 = vpop.f32.mrf.mxu0
        %897 = vmatprep.mubr.bf16.mxu0 0
        %898 = vmatmul.mubr.bf16.gmra.mxu0 %v378
        %v899 = vpop.f32.mrf.mxu0
        %v900 = vadd.f32 %v667, %v899
        %v901 = vpop.f32.mrf.mxu0
        %v902 = vpop.f32.mrf.mxu0
        %v903 = vadd.f32 %v670, %v902
        %v904 = vpop.f32.mrf.mxu0
        %905 = vmatprep.mubr.bf16.mxu0 0
        %906 = vmatmul.mubr.bf16.gmra.mxu0 %v379
        %v907 = vpop.f32.mrf.mxu0
        %v908 = vadd.f32 %v675, %v907
        %v909 = vpop.f32.mrf.mxu0
        %v910 = vpop.f32.mrf.mxu0
        %v911 = vadd.f32 %v678, %v910
        %v912 = vpop.f32.mrf.mxu0
        %913 = vmatprep.mubr.bf16.mxu0 0
        %914 = vmatmul.mubr.bf16.gmra.mxu0 %v380
        %v915 = vpop.f32.mrf.mxu0
        %v916 = vadd.f32 %v683, %v915
        %v917 = vpop.f32.mrf.mxu0
        %v918 = vpop.f32.mrf.mxu0
        %v919 = vadd.f32 %v686, %v918
        %v920 = vpop.f32.mrf.mxu0
        %921 = vmatprep.mubr.bf16.mxu0 0
        %922 = vmatmul.mubr.bf16.gmra.mxu0 %v381
        %v923 = vpop.f32.mrf.mxu0
        %v924 = vadd.f32 %v691, %v923
        %v925 = vpop.f32.mrf.mxu0
        %v926 = vpop.f32.mrf.mxu0
        %v927 = vadd.f32 %v694, %v926
        %v928 = vpop.f32.mrf.mxu0
        %929 = vmatprep.mubr.bf16.mxu0 0
        %930 = vmatmul.mubr.bf16.gmra.mxu0 %v382
        %v931 = vpop.f32.mrf.mxu0
        %v932 = vadd.f32 %v699, %v931
        %v933 = vpop.f32.mrf.mxu0
        %v934 = vpop.f32.mrf.mxu0
        %v935 = vadd.f32 %v702, %v934
        %v936 = vpop.f32.mrf.mxu0
        %937 = vmatprep.mubr.bf16.mxu0 0
        %938 = vmatmul.mubr.bf16.gmra.mxu0 %v383
        %v939 = vpop.f32.mrf.mxu0
        %v940 = vadd.f32 %v707, %v939
        %v941 = vpop.f32.mrf.mxu0
        %v942 = vpop.f32.mrf.mxu0
        %v943 = vadd.f32 %v710, %v942
        %v944 = vpop.f32.mrf.mxu0
        %945 = vdwg.mxu0
        %v946 = vld [vmem:[%s4] sm:$0x1]
        %v948 = vlaneseq
        %v949 = vshrl.u32 %v948, 7
        %v950 = vsub.s32 0, %v949
        %v951 = vrot.slane %v946, %v950
        %v953 = vadd.f32 %v796, %v951
        %v954 = vadd.f32 %v799, %v951
        %v955 = vadd.f32 %v804, %v951
        %v956 = vadd.f32 %v807, %v951
        %v957 = vadd.f32 %v812, %v951
        %v958 = vadd.f32 %v815, %v951
        %v959 = vadd.f32 %v820, %v951
        %v960 = vadd.f32 %v823, %v951
        %v961 = vadd.f32 %v828, %v951
        %v962 = vadd.f32 %v831, %v951
        %v963 = vadd.f32 %v836, %v951
        %v964 = vadd.f32 %v839, %v951
        %v965 = vadd.f32 %v844, %v951
        %v966 = vadd.f32 %v847, %v951
        %v967 = vadd.f32 %v852, %v951
        %v968 = vadd.f32 %v855, %v951
        %v969 = vadd.f32 %v860, %v951
        %v970 = vadd.f32 %v863, %v951
        %v971 = vadd.f32 %v868, %v951
        %v972 = vadd.f32 %v871, %v951
        %v973 = vadd.f32 %v876, %v951
        %v974 = vadd.f32 %v879, %v951
        %v975 = vadd.f32 %v884, %v951
        %v976 = vadd.f32 %v887, %v951
        %v977 = vadd.f32 %v892, %v951
        %v978 = vadd.f32 %v895, %v951
        %v979 = vadd.f32 %v900, %v951
        %v980 = vadd.f32 %v903, %v951
        %v981 = vadd.f32 %v908, %v951
        %v982 = vadd.f32 %v911, %v951
        %v983 = vadd.f32 %v916, %v951
        %v984 = vadd.f32 %v919, %v951
        %v985 = vadd.f32 %v924, %v951
        %v986 = vadd.f32 %v927, %v951
        %v987 = vadd.f32 %v932, %v951
        %v988 = vadd.f32 %v935, %v951
        %v989 = vadd.f32 %v940, %v951
        %v990 = vadd.f32 %v943, %v951
        %v991 = vlaneseq
        %v992 = vand.u32 %v991, 127
        %vm993 = vcmp.ge.s32.totalorder %v992, 12
        %vm994 = vcmp.lt.s32.totalorder %v992, 14
        %vm995 = vmand %vm993, %vm994
        %v996 = vsel %vm995, %v953, -inf
        %v997 = vsel %vm995, %v954, -inf
        %v998 = vsel %vm995, %v955, -inf
        %v999 = vsel %vm995, %v956, -inf
        %v1000 = vsel %vm995, %v957, -inf
        %v1001 = vsel %vm995, %v958, -inf
        %v1002 = vsel %vm995, %v959, -inf
        %v1003 = vsel %vm995, %v960, -inf
        %v1004 = vsel %vm995, %v961, -inf
        %v1005 = vsel %vm995, %v962, -inf
        %v1006 = vsel %vm995, %v963, -inf
        %v1007 = vsel %vm995, %v964, -inf
        %v1008 = vsel %vm995, %v965, -inf
        %v1009 = vsel %vm995, %v966, -inf
        %v1010 = vsel %vm995, %v967, -inf
        %v1011 = vsel %vm995, %v968, -inf
        %v1012 = vsel %vm995, %v969, -inf
        %v1013 = vsel %vm995, %v970, -inf
        %v1014 = vsel %vm995, %v971, -inf
        %v1015 = vsel %vm995, %v972, -inf
        %v1016 = vsel %vm995, %v973, -inf
        %v1017 = vsel %vm995, %v974, -inf
        %v1018 = vsel %vm995, %v975, -inf
        %v1019 = vsel %vm995, %v976, -inf
        %v1020 = vsel %vm995, %v977, -inf
        %v1021 = vsel %vm995, %v978, -inf
        %v1022 = vsel %vm995, %v979, -inf
        %v1023 = vsel %vm995, %v980, -inf
        %v1024 = vsel %vm995, %v981, -inf
        %v1025 = vsel %vm995, %v982, -inf
        %v1026 = vsel %vm995, %v983, -inf
        %v1027 = vsel %vm995, %v984, -inf
        %v1028 = vsel %vm995, %v985, -inf
        %v1029 = vsel %vm995, %v986, -inf
        %v1030 = vsel %vm995, %v987, -inf
        %v1031 = vsel %vm995, %v988, -inf
        %v1032 = vsel %vm995, %v989, -inf
        %v1033 = vsel %vm995, %v990, -inf
        %1034 = vmax.xlane.f32.xlu0 %v996
        %v1035 = vpop.xlane.xlu0 %1034
        %1036 = vmax.xlane.f32.xlu0 %v997
        %v1037 = vpop.xlane.xlu0 %1036
        %1038 = vmax.xlane.f32.xlu0 %v998
        %v1039 = vpop.xlane.xlu0 %1038
        %1040 = vmax.xlane.f32.xlu0 %v999
        %v1041 = vpop.xlane.xlu0 %1040
        %1042 = vmax.xlane.f32.xlu0 %v1000
        %v1043 = vpop.xlane.xlu0 %1042
        %1044 = vmax.xlane.f32.xlu0 %v1001
        %v1045 = vpop.xlane.xlu0 %1044
        %1046 = vmax.xlane.f32.xlu0 %v1002
        %v1047 = vpop.xlane.xlu0 %1046
        %1048 = vmax.xlane.f32.xlu0 %v1003
        %v1049 = vpop.xlane.xlu0 %1048
        %1050 = vmax.xlane.f32.xlu0 %v1004
        %v1051 = vpop.xlane.xlu0 %1050
        %1052 = vmax.xlane.f32.xlu0 %v1005
        %v1053 = vpop.xlane.xlu0 %1052
        %1054 = vmax.xlane.f32.xlu0 %v1006
        %v1055 = vpop.xlane.xlu0 %1054
        %1056 = vmax.xlane.f32.xlu0 %v1007
        %v1057 = vpop.xlane.xlu0 %1056
        %1058 = vmax.xlane.f32.xlu0 %v1008
        %v1059 = vpop.xlane.xlu0 %1058
        %1060 = vmax.xlane.f32.xlu0 %v1009
        %v1061 = vpop.xlane.xlu0 %1060
        %1062 = vmax.xlane.f32.xlu0 %v1010
        %v1063 = vpop.xlane.xlu0 %1062
        %1064 = vmax.xlane.f32.xlu0 %v1011
        %v1065 = vpop.xlane.xlu0 %1064
        %1066 = vmax.xlane.f32.xlu0 %v1012
        %v1067 = vpop.xlane.xlu0 %1066
        %1068 = vmax.xlane.f32.xlu0 %v1013
        %v1069 = vpop.xlane.xlu0 %1068
        %1070 = vmax.xlane.f32.xlu0 %v1014
        %v1071 = vpop.xlane.xlu0 %1070
        %1072 = vmax.xlane.f32.xlu0 %v1015
        %v1073 = vpop.xlane.xlu0 %1072
        %1074 = vmax.xlane.f32.xlu0 %v1016
        %v1075 = vpop.xlane.xlu0 %1074
        %1076 = vmax.xlane.f32.xlu0 %v1017
        %v1077 = vpop.xlane.xlu0 %1076
        %1078 = vmax.xlane.f32.xlu0 %v1018
        %v1079 = vpop.xlane.xlu0 %1078
        %1080 = vmax.xlane.f32.xlu0 %v1019
        %v1081 = vpop.xlane.xlu0 %1080
        %1082 = vmax.xlane.f32.xlu0 %v1020
        %v1083 = vpop.xlane.xlu0 %1082
        %1084 = vmax.xlane.f32.xlu0 %v1021
        %v1085 = vpop.xlane.xlu0 %1084
        %1086 = vmax.xlane.f32.xlu0 %v1022
        %v1087 = vpop.xlane.xlu0 %1086
        %1088 = vmax.xlane.f32.xlu0 %v1023
        %v1089 = vpop.xlane.xlu0 %1088
        %1090 = vmax.xlane.f32.xlu0 %v1024
        %v1091 = vpop.xlane.xlu0 %1090
        %1092 = vmax.xlane.f32.xlu0 %v1025
        %v1093 = vpop.xlane.xlu0 %1092
        %1094 = vmax.xlane.f32.xlu0 %v1026
        %v1095 = vpop.xlane.xlu0 %1094
        %1096 = vmax.xlane.f32.xlu0 %v1027
        %v1097 = vpop.xlane.xlu0 %1096
        %1098 = vmax.xlane.f32.xlu0 %v1028
        %v1099 = vpop.xlane.xlu0 %1098
        %1100 = vmax.xlane.f32.xlu0 %v1029
        %v1101 = vpop.xlane.xlu0 %1100
        %1102 = vmax.xlane.f32.xlu0 %v1030
        %v1103 = vpop.xlane.xlu0 %1102
        %1104 = vmax.xlane.f32.xlu0 %v1031
        %v1105 = vpop.xlane.xlu0 %1104
        %1106 = vmax.xlane.f32.xlu0 %v1032
        %v1107 = vpop.xlane.xlu0 %1106
        %1108 = vmax.xlane.f32.xlu0 %v1033
        %v1109 = vpop.xlane.xlu0 %1108
        %v1110 = vsub.f32 %v996, %v1035
        %v1111 = vsub.f32 %v997, %v1037
        %v1112 = vsub.f32 %v998, %v1039
        %v1113 = vsub.f32 %v999, %v1041
        %v1114 = vsub.f32 %v1000, %v1043
        %v1115 = vsub.f32 %v1001, %v1045
        %v1116 = vsub.f32 %v1002, %v1047
        %v1117 = vsub.f32 %v1003, %v1049
        %v1118 = vsub.f32 %v1004, %v1051
        %v1119 = vsub.f32 %v1005, %v1053
        %v1120 = vsub.f32 %v1006, %v1055
        %v1121 = vsub.f32 %v1007, %v1057
        %v1122 = vsub.f32 %v1008, %v1059
        %v1123 = vsub.f32 %v1009, %v1061
        %v1124 = vsub.f32 %v1010, %v1063
        %v1125 = vsub.f32 %v1011, %v1065
        %v1126 = vsub.f32 %v1012, %v1067
        %v1127 = vsub.f32 %v1013, %v1069
        %v1128 = vsub.f32 %v1014, %v1071
        %v1129 = vsub.f32 %v1015, %v1073
        %v1130 = vsub.f32 %v1016, %v1075
        %v1131 = vsub.f32 %v1017, %v1077
        %v1132 = vsub.f32 %v1018, %v1079
        %v1133 = vsub.f32 %v1019, %v1081
        %v1134 = vsub.f32 %v1020, %v1083
        %v1135 = vsub.f32 %v1021, %v1085
        %v1136 = vsub.f32 %v1022, %v1087
        %v1137 = vsub.f32 %v1023, %v1089
        %v1138 = vsub.f32 %v1024, %v1091
        %v1139 = vsub.f32 %v1025, %v1093
        %v1140 = vsub.f32 %v1026, %v1095
        %v1141 = vsub.f32 %v1027, %v1097
        %v1142 = vsub.f32 %v1028, %v1099
        %v1143 = vsub.f32 %v1029, %v1101
        %v1144 = vsub.f32 %v1030, %v1103
        %v1145 = vsub.f32 %v1031, %v1105
        %v1146 = vsub.f32 %v1032, %v1107
        %v1147 = vsub.f32 %v1033, %v1109
        %v1148 = vmul.f32 %v1110, 1.442695
        %v1149 = vpow.pop %v1148
        %v1150 = vmul.f32 %v1111, 1.442695
        %v1151 = vpow.pop %v1150
        %v1152 = vmul.f32 %v1112, 1.442695
        %v1153 = vpow.pop %v1152
        %v1154 = vmul.f32 %v1113, 1.442695
        %v1155 = vpow.pop %v1154
        %v1156 = vmul.f32 %v1114, 1.442695
        %v1157 = vpow.pop %v1156
        %v1158 = vmul.f32 %v1115, 1.442695
        %v1159 = vpow.pop %v1158
        %v1160 = vmul.f32 %v1116, 1.442695
        %v1161 = vpow.pop %v1160
        %v1162 = vmul.f32 %v1117, 1.442695
        %v1163 = vpow.pop %v1162
        %v1164 = vmul.f32 %v1118, 1.442695
        %v1165 = vpow.pop %v1164
        %v1166 = vmul.f32 %v1119, 1.442695
        %v1167 = vpow.pop %v1166
        %v1168 = vmul.f32 %v1120, 1.442695
        %v1169 = vpow.pop %v1168
        %v1170 = vmul.f32 %v1121, 1.442695
        %v1171 = vpow.pop %v1170
        %v1172 = vmul.f32 %v1122, 1.442695
        %v1173 = vpow.pop %v1172
        %v1174 = vmul.f32 %v1123, 1.442695
        %v1175 = vpow.pop %v1174
        %v1176 = vmul.f32 %v1124, 1.442695
        %v1177 = vpow.pop %v1176
        %v1178 = vmul.f32 %v1125, 1.442695
        %v1179 = vpow.pop %v1178
        %v1180 = vmul.f32 %v1126, 1.442695
        %v1181 = vpow.pop %v1180
        %v1182 = vmul.f32 %v1127, 1.442695
        %v1183 = vpow.pop %v1182
        %v1184 = vmul.f32 %v1128, 1.442695
        %v1185 = vpow.pop %v1184
        %v1186 = vmul.f32 %v1129, 1.442695
        %v1187 = vpow.pop %v1186
        %v1188 = vmul.f32 %v1130, 1.442695
        %v1189 = vpow.pop %v1188
        %v1190 = vmul.f32 %v1131, 1.442695
        %v1191 = vpow.pop %v1190
        %v1192 = vmul.f32 %v1132, 1.442695
        %v1193 = vpow.pop %v1192
        %v1194 = vmul.f32 %v1133, 1.442695
        %v1195 = vpow.pop %v1194
        %v1196 = vmul.f32 %v1134, 1.442695
        %v1197 = vpow.pop %v1196
        %v1198 = vmul.f32 %v1135, 1.442695
        %v1199 = vpow.pop %v1198
        %v1200 = vmul.f32 %v1136, 1.442695
        %v1201 = vpow.pop %v1200
        %v1202 = vmul.f32 %v1137, 1.442695
        %v1203 = vpow.pop %v1202
        %v1204 = vmul.f32 %v1138, 1.442695
        %v1205 = vpow.pop %v1204
        %v1206 = vmul.f32 %v1139, 1.442695
        %v1207 = vpow.pop %v1206
        %v1208 = vmul.f32 %v1140, 1.442695
        %v1209 = vpow.pop %v1208
        %v1210 = vmul.f32 %v1141, 1.442695
        %v1211 = vpow.pop %v1210
        %v1212 = vmul.f32 %v1142, 1.442695
        %v1213 = vpow.pop %v1212
        %v1214 = vmul.f32 %v1143, 1.442695
        %v1215 = vpow.pop %v1214
        %v1216 = vmul.f32 %v1144, 1.442695
        %v1217 = vpow.pop %v1216
        %v1218 = vmul.f32 %v1145, 1.442695
        %v1219 = vpow.pop %v1218
        %v1220 = vmul.f32 %v1146, 1.442695
        %v1221 = vpow.pop %v1220
        %v1222 = vmul.f32 %v1147, 1.442695
        %v1223 = vpow.pop %v1222
        %1224 = vadd.xlane.f32.xlu0 %v1149
        %v1225 = vpop.xlane.xlu0 %1224
        %1226 = vadd.xlane.f32.xlu0 %v1151
        %v1227 = vpop.xlane.xlu0 %1226
        %1228 = vadd.xlane.f32.xlu0 %v1153
        %v1229 = vpop.xlane.xlu0 %1228
        %1230 = vadd.xlane.f32.xlu0 %v1155
        %v1231 = vpop.xlane.xlu0 %1230
        %1232 = vadd.xlane.f32.xlu0 %v1157
        %v1233 = vpop.xlane.xlu0 %1232
        %1234 = vadd.xlane.f32.xlu0 %v1159
        %v1235 = vpop.xlane.xlu0 %1234
        %1236 = vadd.xlane.f32.xlu0 %v1161
        %v1237 = vpop.xlane.xlu0 %1236
        %1238 = vadd.xlane.f32.xlu0 %v1163
        %v1239 = vpop.xlane.xlu0 %1238
        %1240 = vadd.xlane.f32.xlu0 %v1165
        %v1241 = vpop.xlane.xlu0 %1240
        %1242 = vadd.xlane.f32.xlu0 %v1167
        %v1243 = vpop.xlane.xlu0 %1242
        %1244 = vadd.xlane.f32.xlu0 %v1169
        %v1245 = vpop.xlane.xlu0 %1244
        %1246 = vadd.xlane.f32.xlu0 %v1171
        %v1247 = vpop.xlane.xlu0 %1246
        %1248 = vadd.xlane.f32.xlu0 %v1173
        %v1249 = vpop.xlane.xlu0 %1248
        %1250 = vadd.xlane.f32.xlu0 %v1175
        %v1251 = vpop.xlane.xlu0 %1250
        %1252 = vadd.xlane.f32.xlu0 %v1177
        %v1253 = vpop.xlane.xlu0 %1252
        %1254 = vadd.xlane.f32.xlu0 %v1179
        %v1255 = vpop.xlane.xlu0 %1254
        %1256 = vadd.xlane.f32.xlu0 %v1181
        %v1257 = vpop.xlane.xlu0 %1256
        %1258 = vadd.xlane.f32.xlu0 %v1183
        %v1259 = vpop.xlane.xlu0 %1258
        %1260 = vadd.xlane.f32.xlu0 %v1185
        %v1261 = vpop.xlane.xlu0 %1260
        %1262 = vadd.xlane.f32.xlu0 %v1187
        %v1263 = vpop.xlane.xlu0 %1262
        %1264 = vadd.xlane.f32.xlu0 %v1189
        %v1265 = vpop.xlane.xlu0 %1264
        %1266 = vadd.xlane.f32.xlu0 %v1191
        %v1267 = vpop.xlane.xlu0 %1266
        %1268 = vadd.xlane.f32.xlu0 %v1193
        %v1269 = vpop.xlane.xlu0 %1268
        %1270 = vadd.xlane.f32.xlu0 %v1195
        %v1271 = vpop.xlane.xlu0 %1270
        %1272 = vadd.xlane.f32.xlu0 %v1197
        %v1273 = vpop.xlane.xlu0 %1272
        %1274 = vadd.xlane.f32.xlu0 %v1199
        %v1275 = vpop.xlane.xlu0 %1274
        %1276 = vadd.xlane.f32.xlu0 %v1201
        %v1277 = vpop.xlane.xlu0 %1276
        %1278 = vadd.xlane.f32.xlu0 %v1203
        %v1279 = vpop.xlane.xlu0 %1278
        %1280 = vadd.xlane.f32.xlu0 %v1205
        %v1281 = vpop.xlane.xlu0 %1280
        %1282 = vadd.xlane.f32.xlu0 %v1207
        %v1283 = vpop.xlane.xlu0 %1282
        %1284 = vadd.xlane.f32.xlu0 %v1209
        %v1285 = vpop.xlane.xlu0 %1284
        %1286 = vadd.xlane.f32.xlu0 %v1211
        %v1287 = vpop.xlane.xlu0 %1286
        %1288 = vadd.xlane.f32.xlu0 %v1213
        %v1289 = vpop.xlane.xlu0 %1288
        %1290 = vadd.xlane.f32.xlu0 %v1215
        %v1291 = vpop.xlane.xlu0 %1290
        %1292 = vadd.xlane.f32.xlu0 %v1217
        %v1293 = vpop.xlane.xlu0 %1292
        %1294 = vadd.xlane.f32.xlu0 %v1219
        %v1295 = vpop.xlane.xlu0 %1294
        %1296 = vadd.xlane.f32.xlu0 %v1221
        %v1297 = vpop.xlane.xlu0 %1296
        %1298 = vadd.xlane.f32.xlu0 %v1223
        %v1299 = vpop.xlane.xlu0 %1298
        %v1300 = vrcp.pop %v1225
        %v1301 = vrcp.pop %v1227
        %v1302 = vrcp.pop %v1229
        %v1303 = vrcp.pop %v1231
        %v1304 = vrcp.pop %v1233
        %v1305 = vrcp.pop %v1235
        %v1306 = vrcp.pop %v1237
        %v1307 = vrcp.pop %v1239
        %v1308 = vrcp.pop %v1241
        %v1309 = vrcp.pop %v1243
        %v1310 = vrcp.pop %v1245
        %v1311 = vrcp.pop %v1247
        %v1312 = vrcp.pop %v1249
        %v1313 = vrcp.pop %v1251
        %v1314 = vrcp.pop %v1253
        %v1315 = vrcp.pop %v1255
        %v1316 = vrcp.pop %v1257
        %v1317 = vrcp.pop %v1259
        %v1318 = vrcp.pop %v1261
        %v1319 = vrcp.pop %v1263
        %v1320 = vrcp.pop %v1265
        %v1321 = vrcp.pop %v1267
        %v1322 = vrcp.pop %v1269
        %v1323 = vrcp.pop %v1271
        %v1324 = vrcp.pop %v1273
        %v1325 = vrcp.pop %v1275
        %v1326 = vrcp.pop %v1277
        %v1327 = vrcp.pop %v1279
        %v1328 = vrcp.pop %v1281
        %v1329 = vrcp.pop %v1283
        %v1330 = vrcp.pop %v1285
        %v1331 = vrcp.pop %v1287
        %v1332 = vrcp.pop %v1289
        %v1333 = vrcp.pop %v1291
        %v1334 = vrcp.pop %v1293
        %v1335 = vrcp.pop %v1295
        %v1336 = vrcp.pop %v1297
        %v1337 = vrcp.pop %v1299
        %v1338 = vmul.f32 %v1149, %v1300
        %v1339 = vmul.f32 %v1151, %v1301
        %v1340 = vmul.f32 %v1153, %v1302
        %v1341 = vmul.f32 %v1155, %v1303
        %v1342 = vmul.f32 %v1157, %v1304
        %v1343 = vmul.f32 %v1159, %v1305
        %v1344 = vmul.f32 %v1161, %v1306
        %v1345 = vmul.f32 %v1163, %v1307
        %v1346 = vmul.f32 %v1165, %v1308
        %v1347 = vmul.f32 %v1167, %v1309
        %v1348 = vmul.f32 %v1169, %v1310
        %v1349 = vmul.f32 %v1171, %v1311
        %v1350 = vmul.f32 %v1173, %v1312
        %v1351 = vmul.f32 %v1175, %v1313
        %v1352 = vmul.f32 %v1177, %v1314
        %v1353 = vmul.f32 %v1179, %v1315
        %v1354 = vmul.f32 %v1181, %v1316
        %v1355 = vmul.f32 %v1183, %v1317
        %v1356 = vmul.f32 %v1185, %v1318
        %v1357 = vmul.f32 %v1187, %v1319
        %v1358 = vmul.f32 %v1189, %v1320
        %v1359 = vmul.f32 %v1191, %v1321
        %v1360 = vmul.f32 %v1193, %v1322
        %v1361 = vmul.f32 %v1195, %v1323
        %v1362 = vmul.f32 %v1197, %v1324
        %v1363 = vmul.f32 %v1199, %v1325
        %v1364 = vmul.f32 %v1201, %v1326
        %v1365 = vmul.f32 %v1203, %v1327
        %v1366 = vmul.f32 %v1205, %v1328
        %v1367 = vmul.f32 %v1207, %v1329
        %v1368 = vmul.f32 %v1209, %v1330
        %v1369 = vmul.f32 %v1211, %v1331
        %v1370 = vmul.f32 %v1213, %v1332
        %v1371 = vmul.f32 %v1215, %v1333
        %v1372 = vmul.f32 %v1217, %v1334
        %v1373 = vmul.f32 %v1219, %v1335
        %v1374 = vmul.f32 %v1221, %v1336
        %v1375 = vmul.f32 %v1223, %v1337
        %1376 = vrot.lane.b32.xlu0 %v1338, 2
        %v1377 = vpop.permute.xlu0 %1376
        %1378 = vrot.lane.b32.xlu0 %v1339, 2
        %v1379 = vpop.permute.xlu0 %1378
        %1380 = vrot.lane.b32.xlu0 %v1340, 2
        %v1381 = vpop.permute.xlu0 %1380
        %1382 = vrot.lane.b32.xlu0 %v1341, 2
        %v1383 = vpop.permute.xlu0 %1382
        %1384 = vrot.lane.b32.xlu0 %v1342, 2
        %v1385 = vpop.permute.xlu0 %1384
        %1386 = vrot.lane.b32.xlu0 %v1343, 2
        %v1387 = vpop.permute.xlu0 %1386
        %1388 = vrot.lane.b32.xlu0 %v1344, 2
        %v1389 = vpop.permute.xlu0 %1388
        %1390 = vrot.lane.b32.xlu0 %v1345, 2
        %v1391 = vpop.permute.xlu0 %1390
        %1392 = vrot.lane.b32.xlu0 %v1346, 2
        %v1393 = vpop.permute.xlu0 %1392
        %1394 = vrot.lane.b32.xlu0 %v1347, 2
        %v1395 = vpop.permute.xlu0 %1394
        %1396 = vrot.lane.b32.xlu0 %v1348, 2
        %v1397 = vpop.permute.xlu0 %1396
        %1398 = vrot.lane.b32.xlu0 %v1349, 2
        %v1399 = vpop.permute.xlu0 %1398
        %1400 = vrot.lane.b32.xlu0 %v1350, 2
        %v1401 = vpop.permute.xlu0 %1400
        %1402 = vrot.lane.b32.xlu0 %v1351, 2
        %v1403 = vpop.permute.xlu0 %1402
        %1404 = vrot.lane.b32.xlu0 %v1352, 2
        %v1405 = vpop.permute.xlu0 %1404
        %1406 = vrot.lane.b32.xlu0 %v1353, 2
        %v1407 = vpop.permute.xlu0 %1406
        %1408 = vrot.lane.b32.xlu0 %v1354, 2
        %v1409 = vpop.permute.xlu0 %1408
        %1410 = vrot.lane.b32.xlu0 %v1355, 2
        %v1411 = vpop.permute.xlu0 %1410
        %1412 = vrot.lane.b32.xlu0 %v1356, 2
        %v1413 = vpop.permute.xlu0 %1412
        %1414 = vrot.lane.b32.xlu0 %v1357, 2
        %v1415 = vpop.permute.xlu0 %1414
        %1416 = vrot.lane.b32.xlu0 %v1358, 2
        %v1417 = vpop.permute.xlu0 %1416
        %1418 = vrot.lane.b32.xlu0 %v1359, 2
        %v1419 = vpop.permute.xlu0 %1418
        %1420 = vrot.lane.b32.xlu0 %v1360, 2
        %v1421 = vpop.permute.xlu0 %1420
        %1422 = vrot.lane.b32.xlu0 %v1361, 2
        %v1423 = vpop.permute.xlu0 %1422
        %1424 = vrot.lane.b32.xlu0 %v1362, 2
        %v1425 = vpop.permute.xlu0 %1424
        %1426 = vrot.lane.b32.xlu0 %v1363, 2
        %v1427 = vpop.permute.xlu0 %1426
        %1428 = vrot.lane.b32.xlu0 %v1364, 2
        %v1429 = vpop.permute.xlu0 %1428
        %1430 = vrot.lane.b32.xlu0 %v1365, 2
        %v1431 = vpop.permute.xlu0 %1430
        %1432 = vrot.lane.b32.xlu0 %v1366, 2
        %v1433 = vpop.permute.xlu0 %1432
        %1434 = vrot.lane.b32.xlu0 %v1367, 2
        %v1435 = vpop.permute.xlu0 %1434
        %1436 = vrot.lane.b32.xlu0 %v1368, 2
        %v1437 = vpop.permute.xlu0 %1436
        %1438 = vrot.lane.b32.xlu0 %v1369, 2
        %v1439 = vpop.permute.xlu0 %1438
        %1440 = vrot.lane.b32.xlu0 %v1370, 2
        %v1441 = vpop.permute.xlu0 %1440
        %1442 = vrot.lane.b32.xlu0 %v1371, 2
        %v1443 = vpop.permute.xlu0 %1442
        %1444 = vrot.lane.b32.xlu0 %v1372, 2
        %v1445 = vpop.permute.xlu0 %1444
        %1446 = vrot.lane.b32.xlu0 %v1373, 2
        %v1447 = vpop.permute.xlu0 %1446
        %1448 = vrot.lane.b32.xlu0 %v1374, 2
        %v1449 = vpop.permute.xlu0 %1448
        %1450 = vrot.lane.b32.xlu0 %v1375, 2
        %v1451 = vpop.permute.xlu0 %1450
        %v1452 = vsel %vm994, %v953, %v1377
        %v1453 = vsel %vm994, %v954, %v1379
        %v1454 = vsel %vm994, %v955, %v1381
        %v1455 = vsel %vm994, %v956, %v1383
        %v1456 = vsel %vm994, %v957, %v1385
        %v1457 = vsel %vm994, %v958, %v1387
        %v1458 = vsel %vm994, %v959, %v1389
        %v1459 = vsel %vm994, %v960, %v1391
        %v1460 = vsel %vm994, %v961, %v1393
        %v1461 = vsel %vm994, %v962, %v1395
        %v1462 = vsel %vm994, %v963, %v1397
        %v1463 = vsel %vm994, %v964, %v1399
        %v1464 = vsel %vm994, %v965, %v1401
        %v1465 = vsel %vm994, %v966, %v1403
        %v1466 = vsel %vm994, %v967, %v1405
        %v1467 = vsel %vm994, %v968, %v1407
        %v1468 = vsel %vm994, %v969, %v1409
        %v1469 = vsel %vm994, %v970, %v1411
        %v1470 = vsel %vm994, %v971, %v1413
        %v1471 = vsel %vm994, %v972, %v1415
        %v1472 = vsel %vm994, %v973, %v1417
        %v1473 = vsel %vm994, %v974, %v1419
        %v1474 = vsel %vm994, %v975, %v1421
        %v1475 = vsel %vm994, %v976, %v1423
        %v1476 = vsel %vm994, %v977, %v1425
        %v1477 = vsel %vm994, %v978, %v1427
        %v1478 = vsel %vm994, %v979, %v1429
        %v1479 = vsel %vm994, %v980, %v1431
        %v1480 = vsel %vm994, %v981, %v1433
        %v1481 = vsel %vm994, %v982, %v1435
        %v1482 = vsel %vm994, %v983, %v1437
        %v1483 = vsel %vm994, %v984, %v1439
        %v1484 = vsel %vm994, %v985, %v1441
        %v1485 = vsel %vm994, %v986, %v1443
        %v1486 = vsel %vm994, %v987, %v1445
        %v1487 = vsel %vm994, %v988, %v1447
        %v1488 = vsel %vm994, %v989, %v1449
        %v1489 = vsel %vm994, %v990, %v1451
        %v1490 = vpack.c.bf16 %v1453, %v1452
        %v1491 = vpack.c.bf16 %v1455, %v1454
        %v1492 = vpack.c.bf16 %v1457, %v1456
        %v1493 = vpack.c.bf16 %v1459, %v1458
        %v1494 = vpack.c.bf16 %v1461, %v1460
        %v1495 = vpack.c.bf16 %v1463, %v1462
        %v1496 = vpack.c.bf16 %v1465, %v1464
        %v1497 = vpack.c.bf16 %v1467, %v1466
        %v1498 = vpack.c.bf16 %v1469, %v1468
        %v1499 = vpack.c.bf16 %v1471, %v1470
        %v1500 = vpack.c.bf16 %v1473, %v1472
        %v1501 = vpack.c.bf16 %v1475, %v1474
        %v1502 = vpack.c.bf16 %v1477, %v1476
        %v1503 = vpack.c.bf16 %v1479, %v1478
        %v1504 = vpack.c.bf16 %v1481, %v1480
        %v1505 = vpack.c.bf16 %v1483, %v1482
        %v1506 = vpack.c.bf16 %v1485, %v1484
        %v1507 = vpack.c.bf16 %v1487, %v1486
        %v1508 = vpack.c.bf16 %v1489, %v1488
        %v1528 = vunpack.c.l.b16 %v1490
        %v1529 = vunpack.c.h.b16 %v1490
        %v1530 = vunpack.c.l.b16 %v1491
        %v1531 = vunpack.c.h.b16 %v1491
        %v1532 = vunpack.c.l.b16 %v1492
        %v1533 = vunpack.c.h.b16 %v1492
        %v1534 = vunpack.c.l.b16 %v1493
        %v1535 = vunpack.c.h.b16 %v1493
        %v1536 = vunpack.c.l.b16 %v1494
        %v1537 = vunpack.c.h.b16 %v1494
        %v1538 = vunpack.c.l.b16 %v1495
        %v1539 = vunpack.c.h.b16 %v1495
        %v1540 = vunpack.c.l.b16 %v1496
        %v1541 = vunpack.c.h.b16 %v1496
        %v1542 = vunpack.c.l.b16 %v1497
        %v1543 = vunpack.c.h.b16 %v1497
        %v1544 = vunpack.c.l.b16 %v1498
        %v1545 = vunpack.c.h.b16 %v1498
        %v1546 = vunpack.c.l.b16 %v1499
        %v1547 = vunpack.c.h.b16 %v1499
        %v1548 = vunpack.c.l.b16 %v1500
        %v1549 = vunpack.c.h.b16 %v1500
        %v1550 = vunpack.c.l.b16 %v1501
        %v1551 = vunpack.c.h.b16 %v1501
        %v1552 = vunpack.c.l.b16 %v1502
        %v1553 = vunpack.c.h.b16 %v1502
        %v1554 = vunpack.c.l.b16 %v1503
        %v1555 = vunpack.c.h.b16 %v1503
        %v1556 = vunpack.c.l.b16 %v1504
        %v1557 = vunpack.c.h.b16 %v1504
        %v1558 = vunpack.c.l.b16 %v1505
        %v1559 = vunpack.c.h.b16 %v1505
        %v1560 = vunpack.c.l.b16 %v1506
        %v1561 = vunpack.c.h.b16 %v1506
        %v1562 = vunpack.c.l.b16 %v1507
        %v1563 = vunpack.c.h.b16 %v1507
        %v1564 = vunpack.c.l.b16 %v1508
        %v1565 = vunpack.c.h.b16 %v1508
        %v1566 = vpack.c.b16 %v1528, %v1528
        %v1567 = vpack.c.b16 %v1529, %v1529
        %v1568 = vpack.c.b16 %v1530, %v1530
        %v1569 = vpack.c.b16 %v1531, %v1531
        %v1570 = vpack.c.b16 %v1532, %v1532
        %v1571 = vpack.c.b16 %v1533, %v1533
        %v1572 = vpack.c.b16 %v1534, %v1534
        %v1573 = vpack.c.b16 %v1535, %v1535
        %v1574 = vpack.c.b16 %v1536, %v1536
        %v1575 = vpack.c.b16 %v1537, %v1537
        %v1576 = vpack.c.b16 %v1538, %v1538
        %v1577 = vpack.c.b16 %v1539, %v1539
        %v1578 = vpack.c.b16 %v1540, %v1540
        %v1579 = vpack.c.b16 %v1541, %v1541
        %v1580 = vpack.c.b16 %v1542, %v1542
        %v1581 = vpack.c.b16 %v1543, %v1543
        %v1582 = vpack.c.b16 %v1544, %v1544
        %v1583 = vpack.c.b16 %v1545, %v1545
        %v1584 = vpack.c.b16 %v1546, %v1546
        %v1585 = vpack.c.b16 %v1547, %v1547
        %v1586 = vpack.c.b16 %v1548, %v1548
        %v1587 = vpack.c.b16 %v1549, %v1549
        %v1588 = vpack.c.b16 %v1550, %v1550
        %v1589 = vpack.c.b16 %v1551, %v1551
        %v1590 = vpack.c.b16 %v1552, %v1552
        %v1591 = vpack.c.b16 %v1553, %v1553
        %v1592 = vpack.c.b16 %v1554, %v1554
        %v1593 = vpack.c.b16 %v1555, %v1555
        %v1594 = vpack.c.b16 %v1556, %v1556
        %v1595 = vpack.c.b16 %v1557, %v1557
        %v1596 = vpack.c.b16 %v1558, %v1558
        %v1597 = vpack.c.b16 %v1559, %v1559
        %v1598 = vpack.c.b16 %v1560, %v1560
        %v1599 = vpack.c.b16 %v1561, %v1561
        %v1600 = vpack.c.b16 %v1562, %v1562
        %v1601 = vpack.c.b16 %v1563, %v1563
        %v1602 = vpack.c.b16 %v1564, %v1564
        %v1603 = vpack.c.b16 %v1565, %v1565
        %1642 = vst [vmem:[%s323] sm:$0xf] %v1566
        %1643 = vst [vmem:[%s323 + $0x4] sm:$0xf] %v1567
        %1644 = vst [vmem:[%s323 + $0x8] sm:$0xf] %v1568
        %1645 = vst [vmem:[%s323 + $0xc] sm:$0xf] %v1569
        %1646 = vst [vmem:[%s323 + $0x10] sm:$0xf] %v1570
        %1647 = vst [vmem:[%s323 + $0x14] sm:$0xf] %v1571
        %1648 = vst [vmem:[%s323 + $0x18] sm:$0xf] %v1572
        %1649 = vst [vmem:[%s323 + $0x1c] sm:$0xf] %v1573
        %1650 = vst [vmem:[%s323 + $0x20] sm:$0xf] %v1574
        %1651 = vst [vmem:[%s323 + $0x24] sm:$0xf] %v1575
        %1652 = vst [vmem:[%s323 + $0x28] sm:$0xf] %v1576
        %1653 = vst [vmem:[%s323 + $0x2c] sm:$0xf] %v1577
        %1654 = vst [vmem:[%s323 + $0x30] sm:$0xf] %v1578
        %1655 = vst [vmem:[%s323 + $0x34] sm:$0xf] %v1579
        %1656 = vst [vmem:[%s323 + $0x38] sm:$0xf] %v1580
        %1657 = vst [vmem:[%s323 + $0x3c] sm:$0xf] %v1581
        %1658 = vst [vmem:[%s323 + $0x40] sm:$0xf] %v1582
        %1659 = vst [vmem:[%s323 + $0x44] sm:$0xf] %v1583
        %1660 = vst [vmem:[%s323 + $0x48] sm:$0xf] %v1584
        %1661 = vst [vmem:[%s323 + $0x4c] sm:$0xf] %v1585
        %1662 = vst [vmem:[%s323 + $0x50] sm:$0xf] %v1586
        %1663 = vst [vmem:[%s323 + $0x54] sm:$0xf] %v1587
        %1664 = vst [vmem:[%s323 + $0x58] sm:$0xf] %v1588
        %1665 = vst [vmem:[%s323 + $0x5c] sm:$0xf] %v1589
        %1666 = vst [vmem:[%s323 + $0x60] sm:$0xf] %v1590
        %1667 = vst [vmem:[%s323 + $0x64] sm:$0xf] %v1591
        %1668 = vst [vmem:[%s323 + $0x68] sm:$0xf] %v1592
        %1669 = vst [vmem:[%s323 + $0x6c] sm:$0xf] %v1593
        %1670 = vst [vmem:[%s323 + $0x70] sm:$0xf] %v1594
        %1671 = vst [vmem:[%s323 + $0x74] sm:$0xf] %v1595
        %1672 = vst [vmem:[%s323 + $0x78] sm:$0xf] %v1596
        %1673 = vst [vmem:[%s323 + $0x7c] sm:$0xf] %v1597
        %1674 = vst [vmem:[%s323 + $0x80] sm:$0xf] %v1598
        %1675 = vst [vmem:[%s323 + $0x84] sm:$0xf] %v1599
        %1676 = vst [vmem:[%s323 + $0x88] sm:$0xf] %v1600
        %1677 = vst [vmem:[%s323 + $0x8c] sm:$0xf] %v1601
        %1678 = vst [vmem:[%s323 + $0x90] sm:$0xf] %v1602
        %1679 = vst [vmem:[%s323 + $0x94] sm:$0xf] %v1603
        %s1680 = sand.u32 %s165, 1
        %s1681 = scalar_lea.sflag [#allocation4], %s1680
        %s1682 = sand.u32 %s165, 1
        %s1683 = smul.addr %s1682, 152
        %s1684 = scalar_lea.vmem [#allocation10], %s1683
        // Predicated region
        $region57: #{tpu_custom_call.1} parent=39 // pred_check
          %p1685 = pneg %p175
        $region58: #{tpu_custom_call.1} parent=39 // pred_check_branch
          %1687 = sbr.rel (%p1685) target = $region60
        $region59: #{tpu_custom_call.1} parent=39 // pred_region
          %s1688 = smul.u32 38, %s31
          %s1690 = ssub.s32 2432, 2432
          %1691 = vsyncadd %s1681, %s1690
          %s1692 = smul.addr %s30, 38
          %s1693 = sadd.s32 %s1688, %s1692
          %s1694 = smul.addr %s1693, 64
          %s1695 = scalar_lea.hbm %s5, %s1694
          %s1696 = sshll.u32 %s1684, 4
          %s1697 = int_to_ptr.vmem [resolvable:$true] %s1696
          %1702 = dma.vmem_to_hbm [thread:$0]  %s1697, 2432, %s1695, %s1681, 64, 64, 4
        $region60: #{tpu_custom_call.1} parent=39 // pred_fallthru
          _
      $region40: #{tpu_custom_call.1} parent=5 // pred_fallthru
        _
      %p1703 = scmp.le.s32.totalorder 2, %s21
      // Predicated region
      $region61: #{tpu_custom_call.1} parent=5 // pred_check
        %p1704 = pneg %p1703
      $region62: #{tpu_custom_call.1} parent=5 // pred_check_branch
        %1706 = sbr.rel (%p1704) target = $region64
      $region63: #{tpu_custom_call.1} parent=5 // pred_region
        %s1707 = ssub.s32 %s21, 2
        // Predicated region
        $region65: #{tpu_custom_call.1} parent=63 // pred_check
          %p1708 = pneg %p181
        $region66: #{tpu_custom_call.1} parent=63 // pred_check_branch
          %1710 = sbr.rel (%p1708) target = $region68
        $region67: #{tpu_custom_call.1} parent=63 // pred_region
          %s1711 = sand.u32 %s166, 1
          %s1712 = scalar_lea.sflag [#allocation4], %s1711
          %s1713 = sand.u32 %s166, 1
          %s1714 = smul.addr %s1713, 152
          %s1715 = scalar_lea.vmem [#allocation10], %s1714
          %1716 = dma.done %s1712, 2432
        $region68: #{tpu_custom_call.1} parent=63 // pred_fallthru
          _
      $region64: #{tpu_custom_call.1} parent=5 // pred_fallthru
        _
    $region6: #{tpu_custom_call.1} parent=1 // loop_footer
      %s25 = sadd.s32 1, %s21
    $region7: #{tpu_custom_call.1} parent=1 // loop_footer_branch
      %20 = sbr.rel target = $region3
    $region8: #{tpu_custom_call.1} parent=1 // loop_exit
      _
    %1717 = vsyncpa [#allocation3], 1
    %s1718 = scalar_lea.sflag [#allocation3], 1
    %1719 = vsyncpa %s1718, 1
    %1720 = vsyncpa [#allocation6], 1
    %s1721 = scalar_lea.sflag [#allocation6], 1
    %1722 = vsyncpa %s1721, 1
    %1723 = vsyncpa [#allocation9], 1
    %1724 = vsyncpa [#allocation4], 1
    %s1725 = scalar_lea.sflag [#allocation4], 1
    %1726 = vsyncpa %s1725, 1

</llo_original>
